<compile_context>
chip_gen: v7x
topology: tpu7x:2x2x1
jax: 0.10.0
libtpu: 0.0.40
codegen_flags: <defaults>
</compile_context>

<pallas_src>
import jax
import jax.numpy as jnp
from jax import lax
from jax.experimental import pallas as pl
from jax.experimental.pallas import tpu as pltpu

KSIZE = 7
PAD = (KSIZE - 1) // 2  # 3


# --------------------------------------------------------------------------------------
# Shared in-kernel helpers
# --------------------------------------------------------------------------------------
def _conv7_sigmoid(w_ref, b_ref, maxp, meanp):
    """1-D 7-tap cross-correlation along L (zero padded) + bias + sigmoid.
    w_ref: SMEM (14,) f32 -> w[0:7] taps for the max channel, w[7:14] for the mean channel.
    maxp/meanp: (bt, L) f32, lane-dense.  Returns (bt, L) f32."""
    bt, L = maxp.shape
    zpad = jnp.zeros((bt, PAD), jnp.float32)
    maxp_p = jnp.concatenate([zpad, maxp, zpad], axis=1)      # (bt, L + 6)
    meanp_p = jnp.concatenate([zpad, meanp, zpad], axis=1)    # (bt, L + 6)
    s = jnp.full((bt, L), b_ref[0], dtype=jnp.float32)
    for kh in range(KSIZE):
        s = s + (w_ref[kh] * maxp_p[:, kh:kh + L]
                 + w_ref[KSIZE + kh] * meanp_p[:, kh:kh + L])
    return jax.nn.sigmoid(s)


def _flatten_params(conv_weight, conv_bias):
    # Only the centre kw column (index PAD) of the 7x7 kernel multiplies real data
    # (the W axis has extent 1 with zero padding 3).
    w_flat = conv_weight[0, :, :, PAD].reshape(-1).astype(jnp.float32)   # (14,)
    b_flat = conv_bias.reshape(-1).astype(jnp.float32)                   # (1,)
    return w_flat, b_flat


# --------------------------------------------------------------------------------------
# Generation-aware budgets / block picking
# --------------------------------------------------------------------------------------
def _tpu_budgets():
    """Pick block-size target, block floor and scoped-VMEM limit per TPU generation."""
    vmem_cap = None
    try:
        vmem_cap = int(pltpu.get_tpu_info().vmem_capacity_bytes)
    except Exception:
        vmem_cap = None
    if vmem_cap is None or vmem_cap <= 64 * 1024 * 1024:
        # v7x-class (64 MiB VMEM, 2 TensorCores) -- or unknown: be conservative.
        return {"target": 6 * 2**20, "min_block": 512 * 1024,
                "vmem_limit": 48 * 2**20, "prefer_even_grid": True}
    # v5e / v6e class (128 MiB VMEM, single TensorCore).
    return {"target": 12 * 2**20, "min_block": 2 * 2**20,
            "vmem_limit": 96 * 2**20, "prefer_even_grid": False}


def _pick_batch_block(batch, per_batch_bytes, target_bytes, min_block_bytes,
                      prefer_even_grid):
    """Largest divisor of `batch` whose (bt, L, C) block fits `target_bytes`.
    Returns None if even a single batch element does not fit (caller uses the
    two-pass path).  Prefers >= 2 grid steps (DMA/compute overlap; on v7x an even
    number of steps so both TensorCores get equal work) as long as blocks stay
    above `min_block_bytes`."""
    divisors = [d for d in range(1, batch + 1) if batch % d == 0]
    fitting = [d for d in divisors if d * per_batch_bytes <= target_bytes]
    if not fitting:
        return None
    bt = max(fitting)

    def acceptable(d, need_even):
        g = batch // d
        if g < 2 or d * per_batch_bytes < min_block_bytes:
            return False
        return (g % 2 == 0) if need_even else True

    grid = batch // bt
    if prefer_even_grid and (grid < 2 or grid % 2):
        cands = [d for d in fitting if acceptable(d, True)]
        if not cands and grid < 2:
            cands = [d for d in fitting if acceptable(d, False)]
        if cands:
            bt = max(cands)
    elif grid < 2:
        cands = [d for d in fitting if acceptable(d, False)]
        if cands:
            bt = max(cands)
    return bt


def _pick_two_pass_tiles(L, C, itemsize, target):
    """Tiles for the two-pass path: pass-1 x tile (1, lt, ct); pass-2 tile (1, lt2, C).
    When L is tiled, lt is kept a multiple of 128 so accumulator lane slices stay
    aligned."""
    budget = max(target // 2, 2**20)
    if L * C * itemsize <= budget:
        lt, ct = L, C
    elif L * 128 * itemsize <= budget:
        lt = L
        ct = min(C, max(128, (budget // (L * itemsize)) // 128 * 128))
    else:
        ct = min(C, 128)
        lt = min(L, max(128, (budget // (ct * itemsize)) // 128 * 128))
    lt2 = min(L, max(8, (target // (C * itemsize)) // 8 * 8))
    return lt, ct, lt2


# --------------------------------------------------------------------------------------
# Path A: single-pass, batch-blocked (each block covers full (L, C))
# --------------------------------------------------------------------------------------
def _gate_block_kernel(w_ref, b_ref, x_ref, o_ref):
    x = x_ref[...]                                             # (bt, L, C), native dtype
    C = x.shape[2]
    # Channel pooling, lane-dense [bt, L]; only the pooled signal is f32.
    maxp = jnp.max(x, axis=2).astype(jnp.float32)
    meanp = jnp.sum(x, axis=2, dtype=jnp.float32) * (1.0 / C)
    scale = _conv7_sigmoid(w_ref, b_ref, maxp, meanp)          # (bt, L) f32
    # Gate multiply in the input dtype (no f32 materialization of the block).
    o_ref[...] = x * scale.astype(x.dtype)[:, :, None]


def _spatial_gate_single_pass(x, w_flat, b_flat, bt, vmem_limit, donate_input=False):
    B, L, C = x.shape
    grid = (B // bt,)
    return pl.pallas_call(
        _gate_block_kernel,
        out_shape=jax.ShapeDtypeStruct((B, L, C), x.dtype),
        grid=grid,
        in_specs=[
            pl.BlockSpec(memory_space=pltpu.MemorySpace.SMEM),   # w_flat (14,)
            pl.BlockSpec(memory_space=pltpu.MemorySpace.SMEM),   # bias   (1,)
            pl.BlockSpec((bt, L, C), lambda i: (i, 0, 0)),       # x block
        ],
        out_specs=pl.BlockSpec((bt, L, C), lambda i: (i, 0, 0)),
        compiler_params=pltpu.CompilerParams(
            dimension_semantics=("parallel",),
            vmem_limit_bytes=vmem_limit),
        input_output_aliases=({2: 0} if donate_input else {}),
    )(w_flat, b_flat, x)


# --------------------------------------------------------------------------------------
# Path B: two-pass (C-chunked / L-tiled scale pass + tiled gating multiply)
# --------------------------------------------------------------------------------------
def _spatial_gate_two_pass(x, w_flat, b_flat, *, target_bytes, vmem_limit_bytes,
                           donate_input=False, tiles=None):
    B, L, C = x.shape
    itemsize = jnp.dtype(x.dtype).itemsize
    if tiles is None:
        lt, ct, lt2 = _pick_two_pass_tiles(L, C, itemsize, target_bytes)
    else:
        lt, ct, lt2 = tiles
    nl, nc = pl.cdiv(L, lt), pl.cdiv(C, ct)
    nl2 = pl.cdiv(L, lt2)
    lpad = nl * lt

    # ---- pass 1: pooled max/mean accumulation over C, then conv + sigmoid per batch ---
    def scale_kernel(w_ref, b_ref, x_ref, scale_ref, m_ref, s_ref):
        l = pl.program_id(1)
        c = pl.program_id(2)
        l0 = pl.multiple_of(l * lt, lt)

        xf = x_ref[...].astype(jnp.float32)                    # (1, lt, ct) -- small tile
        if C % ct:
            col = c * ct + lax.broadcasted_iota(jnp.int32, xf.shape, 2)
            valid = col < C
            x_max = jnp.where(valid, xf, -jnp.inf)
            x_sum = jnp.where(valid, xf, 0.0)
        else:
            x_max, x_sum = xf, xf
        pmax = jnp.max(x_max, axis=2)                          # (1, lt)
        psum = jnp.sum(x_sum, axis=2)                          # (1, lt)

        @pl.when(c == 0)
        def _():
            m_ref[:, pl.ds(l0, lt)] = pmax
            s_ref[:, pl.ds(l0, lt)] = psum

        @pl.when(c > 0)
        def _():
            m_ref[:, pl.ds(l0, lt)] = jnp.maximum(m_ref[:, pl.ds(l0, lt)], pmax)
            s_ref[:, pl.ds(l0, lt)] = s_ref[:, pl.ds(l0, lt)] + psum

        @pl.when(jnp.logical_and(l == nl - 1, c == nc - 1))
        def _():
            maxp = m_ref[:, :L]
            meanp = s_ref[:, :L] * (1.0 / C)
            scale = _conv7_sigmoid(w_ref, b_ref, maxp, meanp)  # (1, L) f32
            scale_ref[...] = scale[:, :, None]                 # (1, L, 1)

    scale_arr = pl.pallas_call(
        scale_kernel,
        out_shape=jax.ShapeDtypeStruct((B, L, 1), jnp.float32),
        grid=(B, nl, nc),
        in_specs=[
            pl.BlockSpec(memory_space=pltpu.MemorySpace.SMEM),
            pl.BlockSpec(memory_space=pltpu.MemorySpace.SMEM),
            pl.BlockSpec((1, lt, ct), lambda b, l, c: (b, l, c)),
        ],
        out_specs=pl.BlockSpec((1, L, 1), lambda b, l, c: (b, 0, 0)),
        scratch_shapes=[pltpu.VMEM((1, lpad), jnp.float32),    # running max over C
                        pltpu.VMEM((1, lpad), jnp.float32)],   # running sum over C
        compiler_params=pltpu.CompilerParams(
            dimension_semantics=("parallel", "arbitrary", "arbitrary"),
            vmem_limit_bytes=vmem_limit_bytes),
    )(w_flat, b_flat, x)

    # ---- pass 2: gating multiply, fully parallel over (B, L tiles) -------------------
    def mul_kernel(x_ref, sc_ref, o_ref):
        xb = x_ref[...]
        o_ref[...] = xb * sc_ref[...].astype(xb.dtype)

    return pl.pallas_call(
        mul_kernel,
        out_shape=jax.ShapeDtypeStruct((B, L, C), x.dtype),
        grid=(B, nl2),
        in_specs=[pl.BlockSpec((1, lt2, C), lambda b, l: (b, l, 0)),
                  pl.BlockSpec((1, lt2, 1), lambda b, l: (b, l, 0))],
        out_specs=pl.BlockSpec((1, lt2, C), lambda b, l: (b, l, 0)),
        compiler_params=pltpu.CompilerParams(
            dimension_semantics=("parallel", "parallel"),
            vmem_limit_bytes=vmem_limit_bytes),
        input_output_aliases=({0: 0} if donate_input else {}),
    )(x, scale_arr)


# --------------------------------------------------------------------------------------
# Public entry point
# --------------------------------------------------------------------------------------
def spatial_gate_pallas(x, conv_weight, conv_bias, *, donate_input=False,
                        target_block_bytes=None, vmem_limit_bytes=None):
    """x: [B, L, C]; conv_weight: [1, 2, 7, 7]; conv_bias: [1]."""
    B, L, C = x.shape
    w_flat, b_flat = _flatten_params(conv_weight, conv_bias)

    budgets = _tpu_budgets()
    target = target_block_bytes or budgets["target"]
    vmem_limit = vmem_limit_bytes or budgets["vmem_limit"]

    per_batch_bytes = L * C * jnp.dtype(x.dtype).itemsize
    bt = _pick_batch_block(B, per_batch_bytes, target, budgets["min_block"],
                           budgets["prefer_even_grid"])
    if bt is not None:
        return _spatial_gate_single_pass(x, w_flat, b_flat, bt, vmem_limit,
                                         donate_input=donate_input)
    return _spatial_gate_two_pass(x, w_flat, b_flat, target_bytes=target,
                                  vmem_limit_bytes=vmem_limit,
                                  donate_input=donate_input)


# --------------------------------------------------------------------------------------
# Pure-JAX reference mirroring the PyTorch module exactly
# --------------------------------------------------------------------------------------
def spatial_gate_ref(x, w_full, bias):
    xp = jnp.transpose(x, (0, 2, 1))[..., None]                    # [B, C, L, 1]
    mx = jnp.max(xp, axis=1, keepdims=True)
    mn = jnp.mean(xp, axis=1, keepdims=True)
    comp = jnp.concatenate([mx, mn], axis=1)                       # [B, 2, L, 1]
    out = lax.conv_general_dilated(
        comp, w_full, window_strides=(1, 1),
        padding=((PAD, PAD), (PAD, PAD)),
        dimension_numbers=("NCHW", "OIHW", "NCHW"),
    ) + bias.reshape(1, 1, 1, 1)                                   # [B, 1, L, 1]
    scale = jax.nn.sigmoid(out)
    y = xp * scale
    return jnp.transpose(y[..., 0], (0, 2, 1))                     # [B, L, C]


if __name__ == "__main__":
    key = jax.random.PRNGKey(0)
    kx, kw, kb = jax.random.split(key, 3)

    # Deterministic Conv2d(2, 1, 7, padding=3) parameters (kaiming-uniform-like).
    fan_in = 2 * KSIZE * KSIZE
    bound = 1.0 / float(fan_in ** 0.5)
    w_full = jax.random.uniform(kw, (1, 2, KSIZE, KSIZE),
                                minval=-bound, maxval=bound, dtype=jnp.float32)
    bias = jax.random.uniform(kb, (1,), minval=-bound, maxval=bound,
                              dtype=jnp.float32)

    # 1) Module shape [B, L, C] = [2, 320, 768] (x = torch.ones([2, 320, 768]) spec),
    #    f32 -> single-pass batch-blocked path.
    B, L, C = 2, 320, 768
    x = jax.random.normal(kx, (B, L, C), dtype=jnp.float32)
    out = jax.block_until_ready(spatial_gate_pallas(x, w_full, bias))
    ref = spatial_gate_ref(x, w_full, bias)
    assert out.shape == (B, L, C)
    err = float(jnp.max(jnp.abs(out - ref)))
    assert jnp.allclose(out, ref, atol=1e-5, rtol=1e-5), f"single-pass f32 err={err}"

    # 2) bf16 input: gating multiply stays in bf16 (no f32 block materialization).
    xb = x.astype(jnp.bfloat16)
    outb = jax.block_until_ready(spatial_gate_pallas(xb, w_full, bias))
    assert outb.dtype == jnp.bfloat16
    refb = spatial_gate_ref(xb.astype(jnp.float32), w_full, bias)
    errb = float(jnp.max(jnp.abs(outb.astype(jnp.float32) - refb)))
    assert errb < 5e-2, f"single-pass bf16 err={errb}"

    # 3) Two-pass path (forced with small tiles) exercising partial C chunks (masking)
    #    and partial L tiles in both passes.
    B2, L2, C2 = 2, 320, 320
    x2 = jax.random.normal(jax.random.PRNGKey(1), (B2, L2, C2), dtype=jnp.float32)
    w_flat2, b_flat2 = _flatten_params(w_full, bias)
    out2 = jax.block_until_ready(
        _spatial_gate_two_pass(x2, w_flat2, b_flat2,
                               target_bytes=2 * 2**20,
                               vmem_limit_bytes=48 * 2**20,
                               tiles=(128, 256, 192)))
    ref2 = spatial_gate_ref(x2, w_full, bias)
    err2 = float(jnp.max(jnp.abs(out2 - ref2)))
    assert jnp.allclose(out2, ref2, atol=1e-5, rtol=1e-5), f"two-pass f32 err={err2}"

    print("KERNEL_OK")
</pallas_src>

<mosaic_0001>
module attributes {stable_mosaic.version = 11 : i64} {
  func.func @_gate_block_kernel(%arg0: i32, %arg1: memref<14xf32, #tpu.memory_space<smem>>, %arg2: memref<1xf32, #tpu.memory_space<smem>>, %arg3: memref<1x320x768xf32, #tpu.memory_space<vmem>>, %arg4: memref<1x320x768xf32, #tpu.memory_space<vmem>>) attributes {dimension_semantics = [#tpu.dimension_semantics<parallel>], iteration_bounds = array<i64: 2>, scalar_prefetch = 0 : i64, scratch_operands = 0 : i64, tpu.core_type = #tpu.core_type<tc>, window_params = [{transform_indices = @transform_0, window_bounds = array<i64: 14>}, {transform_indices = @transform_1, window_bounds = array<i64: 1>}, {transform_indices = @transform_2, window_bounds = array<i64: 1, 320, 768>}, {transform_indices = @transform_3, window_bounds = array<i64: 1, 320, 768>}]} {
    %c0 = arith.constant 0 : index
    %c0_0 = arith.constant 0 : index
    %c0_1 = arith.constant 0 : index
    %0 = vector.load %arg3[%c0, %c0_0, %c0_1] : memref<1x320x768xf32, #tpu.memory_space<vmem>>, vector<1x320x768xf32>
    %cst = arith.constant dense<0xFF800000> : vector<1x320xf32>
    %1 = vector.multi_reduction <maximumf>, %0, %cst [2] : vector<1x320x768xf32> to vector<1x320xf32>
    %cst_2 = arith.constant dense<0.000000e+00> : vector<1x320xf32>
    %2 = vector.multi_reduction <add>, %0, %cst_2 [2] : vector<1x320x768xf32> to vector<1x320xf32>
    %cst_3 = arith.constant 0.00130208337 : f32
    %3 = vector.broadcast %cst_3 : f32 to vector<1x320xf32>
    %4 = arith.mulf %2, %3 : vector<1x320xf32>
    %cst_4 = arith.constant 0.000000e+00 : f32
    %5 = vector.broadcast %cst_4 : f32 to vector<1x3xf32>
    %6 = tpu.concatenate %5, %1, %5 in 1 : vector<1x3xf32>, vector<1x320xf32>, vector<1x3xf32> -> vector<1x326xf32>
    %7 = tpu.concatenate %5, %4, %5 in 1 : vector<1x3xf32>, vector<1x320xf32>, vector<1x3xf32> -> vector<1x326xf32>
    %c0_5 = arith.constant 0 : index
    %8 = memref.load %arg2[%c0_5] : memref<1xf32, #tpu.memory_space<smem>>
    %9 = vector.broadcast %8 : f32 to vector<1x320xf32>
    %c0_6 = arith.constant 0 : index
    %10 = memref.load %arg1[%c0_6] : memref<14xf32, #tpu.memory_space<smem>>
    %11 = vector.extract_strided_slice %6 {offsets = [0, 0], sizes = [1, 320], strides = [1, 1]} : vector<1x326xf32> to vector<1x320xf32>
    %12 = vector.broadcast %10 : f32 to vector<1x320xf32>
    %13 = arith.mulf %12, %11 : vector<1x320xf32>
    %c7 = arith.constant 7 : index
    %14 = memref.load %arg1[%c7] : memref<14xf32, #tpu.memory_space<smem>>
    %15 = vector.extract_strided_slice %7 {offsets = [0, 0], sizes = [1, 320], strides = [1, 1]} : vector<1x326xf32> to vector<1x320xf32>
    %16 = vector.broadcast %14 : f32 to vector<1x320xf32>
    %17 = arith.mulf %16, %15 : vector<1x320xf32>
    %18 = arith.addf %13, %17 : vector<1x320xf32>
    %19 = arith.addf %9, %18 : vector<1x320xf32>
    %c1 = arith.constant 1 : index
    %20 = memref.load %arg1[%c1] : memref<14xf32, #tpu.memory_space<smem>>
    %21 = vector.extract_strided_slice %6 {offsets = [0, 1], sizes = [1, 320], strides = [1, 1]} : vector<1x326xf32> to vector<1x320xf32>
    %22 = vector.broadcast %20 : f32 to vector<1x320xf32>
    %23 = arith.mulf %22, %21 : vector<1x320xf32>
    %c8 = arith.constant 8 : index
    %24 = memref.load %arg1[%c8] : memref<14xf32, #tpu.memory_space<smem>>
    %25 = vector.extract_strided_slice %7 {offsets = [0, 1], sizes = [1, 320], strides = [1, 1]} : vector<1x326xf32> to vector<1x320xf32>
    %26 = vector.broadcast %24 : f32 to vector<1x320xf32>
    %27 = arith.mulf %26, %25 : vector<1x320xf32>
    %28 = arith.addf %23, %27 : vector<1x320xf32>
    %29 = arith.addf %19, %28 : vector<1x320xf32>
    %c2 = arith.constant 2 : index
    %30 = memref.load %arg1[%c2] : memref<14xf32, #tpu.memory_space<smem>>
    %31 = vector.extract_strided_slice %6 {offsets = [0, 2], sizes = [1, 320], strides = [1, 1]} : vector<1x326xf32> to vector<1x320xf32>
    %32 = vector.broadcast %30 : f32 to vector<1x320xf32>
    %33 = arith.mulf %32, %31 : vector<1x320xf32>
    %c9 = arith.constant 9 : index
    %34 = memref.load %arg1[%c9] : memref<14xf32, #tpu.memory_space<smem>>
    %35 = vector.extract_strided_slice %7 {offsets = [0, 2], sizes = [1, 320], strides = [1, 1]} : vector<1x326xf32> to vector<1x320xf32>
    %36 = vector.broadcast %34 : f32 to vector<1x320xf32>
    %37 = arith.mulf %36, %35 : vector<1x320xf32>
    %38 = arith.addf %33, %37 : vector<1x320xf32>
    %39 = arith.addf %29, %38 : vector<1x320xf32>
    %c3 = arith.constant 3 : index
    %40 = memref.load %arg1[%c3] : memref<14xf32, #tpu.memory_space<smem>>
    %41 = vector.extract_strided_slice %6 {offsets = [0, 3], sizes = [1, 320], strides = [1, 1]} : vector<1x326xf32> to vector<1x320xf32>
    %42 = vector.broadcast %40 : f32 to vector<1x320xf32>
    %43 = arith.mulf %42, %41 : vector<1x320xf32>
    %c10 = arith.constant 10 : index
    %44 = memref.load %arg1[%c10] : memref<14xf32, #tpu.memory_space<smem>>
    %45 = vector.extract_strided_slice %7 {offsets = [0, 3], sizes = [1, 320], strides = [1, 1]} : vector<1x326xf32> to vector<1x320xf32>
    %46 = vector.broadcast %44 : f32 to vector<1x320xf32>
    %47 = arith.mulf %46, %45 : vector<1x320xf32>
    %48 = arith.addf %43, %47 : vector<1x320xf32>
    %49 = arith.addf %39, %48 : vector<1x320xf32>
    %c4 = arith.constant 4 : index
    %50 = memref.load %arg1[%c4] : memref<14xf32, #tpu.memory_space<smem>>
    %51 = vector.extract_strided_slice %6 {offsets = [0, 4], sizes = [1, 320], strides = [1, 1]} : vector<1x326xf32> to vector<1x320xf32>
    %52 = vector.broadcast %50 : f32 to vector<1x320xf32>
    %53 = arith.mulf %52, %51 : vector<1x320xf32>
    %c11 = arith.constant 11 : index
    %54 = memref.load %arg1[%c11] : memref<14xf32, #tpu.memory_space<smem>>
    %55 = vector.extract_strided_slice %7 {offsets = [0, 4], sizes = [1, 320], strides = [1, 1]} : vector<1x326xf32> to vector<1x320xf32>
    %56 = vector.broadcast %54 : f32 to vector<1x320xf32>
    %57 = arith.mulf %56, %55 : vector<1x320xf32>
    %58 = arith.addf %53, %57 : vector<1x320xf32>
    %59 = arith.addf %49, %58 : vector<1x320xf32>
    %c5 = arith.constant 5 : index
    %60 = memref.load %arg1[%c5] : memref<14xf32, #tpu.memory_space<smem>>
    %61 = vector.extract_strided_slice %6 {offsets = [0, 5], sizes = [1, 320], strides = [1, 1]} : vector<1x326xf32> to vector<1x320xf32>
    %62 = vector.broadcast %60 : f32 to vector<1x320xf32>
    %63 = arith.mulf %62, %61 : vector<1x320xf32>
    %c12 = arith.constant 12 : index
    %64 = memref.load %arg1[%c12] : memref<14xf32, #tpu.memory_space<smem>>
    %65 = vector.extract_strided_slice %7 {offsets = [0, 5], sizes = [1, 320], strides = [1, 1]} : vector<1x326xf32> to vector<1x320xf32>
    %66 = vector.broadcast %64 : f32 to vector<1x320xf32>
    %67 = arith.mulf %66, %65 : vector<1x320xf32>
    %68 = arith.addf %63, %67 : vector<1x320xf32>
    %69 = arith.addf %59, %68 : vector<1x320xf32>
    %c6 = arith.constant 6 : index
    %70 = memref.load %arg1[%c6] : memref<14xf32, #tpu.memory_space<smem>>
    %71 = vector.extract_strided_slice %6 {offsets = [0, 6], sizes = [1, 320], strides = [1, 1]} : vector<1x326xf32> to vector<1x320xf32>
    %72 = vector.broadcast %70 : f32 to vector<1x320xf32>
    %73 = arith.mulf %72, %71 : vector<1x320xf32>
    %c13 = arith.constant 13 : index
    %74 = memref.load %arg1[%c13] : memref<14xf32, #tpu.memory_space<smem>>
    %75 = vector.extract_strided_slice %7 {offsets = [0, 6], sizes = [1, 320], strides = [1, 1]} : vector<1x326xf32> to vector<1x320xf32>
    %76 = vector.broadcast %74 : f32 to vector<1x320xf32>
    %77 = arith.mulf %76, %75 : vector<1x320xf32>
    %78 = arith.addf %73, %77 : vector<1x320xf32>
    %79 = arith.addf %69, %78 : vector<1x320xf32>
    %80 = arith.negf %79 : vector<1x320xf32>
    %81 = math.exp %80 : vector<1x320xf32>
    %cst_7 = arith.constant 1.000000e+00 : f32
    %82 = vector.broadcast %cst_7 : f32 to vector<1x320xf32>
    %83 = arith.addf %82, %81 : vector<1x320xf32>
    %84 = arith.divf %82, %83 : vector<1x320xf32>
    %85 = vector.shape_cast %84 : vector<1x320xf32> to vector<1x320x1xf32>
    %86 = vector.broadcast %85 : vector<1x320x1xf32> to vector<1x320x768xf32>
    %87 = arith.mulf %0, %86 : vector<1x320x768xf32>
    %c0_8 = arith.constant 0 : index
    %c0_9 = arith.constant 0 : index
    %c0_10 = arith.constant 0 : index
    %88 = vector.load %arg4[%c0_8, %c0_9, %c0_10] : memref<1x320x768xf32, #tpu.memory_space<vmem>>, vector<1x320x768xf32>
    tpu.vector_store %arg4[%c0_8, %c0_9, %c0_10], %87 {strides = array<i32>} : memref<1x320x768xf32, #tpu.memory_space<vmem>>, vector<1x320x768xf32>,
    return
  }
  func.func @transform_0(%arg0: i32) -> i32 {
    %c0_i32 = arith.constant 0 : i32
    %c0_i32_0 = arith.constant 0 : i32
    return %c0_i32 : i32
  }
  func.func @transform_1(%arg0: i32) -> i32 {
    %c0_i32 = arith.constant 0 : i32
    %c0_i32_0 = arith.constant 0 : i32
    return %c0_i32 : i32
  }
  func.func @transform_2(%arg0: i32) -> (i32, i32, i32) {
    %c0_i32 = arith.constant 0 : i32
    %c0_i32_0 = arith.constant 0 : i32
    %c0_i32_1 = arith.constant 0 : i32
    return %arg0, %c0_i32, %c0_i32_0 : i32, i32, i32
  }
  func.func @transform_3(%arg0: i32) -> (i32, i32, i32) {
    %c0_i32 = arith.constant 0 : i32
    %c0_i32_0 = arith.constant 0 : i32
    %c0_i32_1 = arith.constant 0 : i32
    return %arg0, %c0_i32, %c0_i32_0 : i32, i32, i32
  }
}

</mosaic_0001>

<llo_original>
// kernel: tpu_custom_call.1
$region0: #{tpu_custom_call.1}
  #allocation0 [shape = 'u32[]', space=smem, size = 0x4, offset = 0x4, fixed_abs, tag = 'smem constant byte address 0x4 - core index']
  #allocation1 [shape = 'u32[144,128]{1,0:T(1,128)}', space=vmem, size = 0x12000, scoped, tag = 'internal scratch']
  #allocation2 [shape = 'f32[1]{0:T(128)S(6)}', space=smem, size = 0x200, scoped, tag = 'scoped memory for tpu_custom_call.1']
  %s0 = inlined_call_operand.hbm [shape: f32[14], index: 0, kind: input, shape index: {}]
  %s1 = inlined_call_operand.<no memory space> [shape: f32[1], index: 1, kind: input, shape index: {}]
  %s2 = inlined_call_operand.hbm [shape: f32[2,320,768], index: 2, kind: input, shape index: {}]
  %s3 = inlined_call_operand.hbm [shape: f32[2,320,768], index: 3, kind: output, shape index: {}]
  %s4 = sld [smem:[#allocation0]]
  $region53: #{tpu_custom_call.1} parent=0
    _
  %s6 = ssub.s32 1, %s4
  %s7 = scalar_select 0, %s6, %s4
  %8 = sst [smem:[#allocation2]] %s1
  $region1: #{tpu_custom_call.1} parent=0
    #allocation3 [shape = 'u8[512]{0}', space=smem, size = 0x200, scoped, tag = 'input window, operand 0, single buffered']
    #allocation4 [shape = 's32[2]{0}', space=sflag, size = 0x8, scoped, tag = 'scoped memory for tpu_custom_call.1']
    #allocation5 [shape = 's32[2]{0}', space=sflag, size = 0x8, scoped, tag = 'scoped memory for tpu_custom_call.1']
    #allocation6 [shape = 's32[2]{0}', space=sflag, size = 0x8, scoped, tag = 'scoped memory for tpu_custom_call.1']
    #allocation7 [shape = 'u8[1966080]{0}', space=vmem, size = 0x1e0000, scoped, tag = 'input window, operand 2']
    #allocation8 [shape = 'u8[1966080]{0}', space=vmem, size = 0x1e0000, scoped, tag = 'output window, operand 0']
    %9 = vsyncpa [#allocation6], 0
    %10 = vsyncpa [#allocation4], 0
    %s11 = scalar_lea.sflag [#allocation4], 1
    %12 = vsyncpa %s11, 0
    %13 = vsyncpa [#allocation5], 0
    %s14 = scalar_lea.sflag [#allocation5], 1
    %15 = vsyncpa %s14, 0
    loop: start=0, step=1, limit=4
    $region2: #{tpu_custom_call.1} parent=1 // loop_pre_header
      _
    $region3: #{tpu_custom_call.1} parent=1 // loop_header
      %s17 = sphi 0, %s21
      %p18 = scmp.ge.s32.totalorder %s17, 4
      %s25 = sphi 0, %s25
      %s27 = sphi 0, %s25
      %s28 = sphi 0, %s27
      %s42 = sphi 0, %s28
      %s46 = sphi 0, %s46
      %s48 = sphi 0, %s46
      %s49 = sphi 0, %s48
      %s63 = sphi 0, %s49
      %s69 = sphi 0, %s71
      %s72 = sphi 0, %s69
      %s73 = sphi 0, %s72
      %s89 = sphi 0, %s73
      %s95 = sphi 0, %s97
      %s98 = sphi 0, %s95
      %s99 = sphi 0, %s98
      %s115 = sphi 0, %s99
    $region4: #{tpu_custom_call.1} parent=1 // loop_header_branch
      %20 = sbr.rel (%p18) target = $region8
    $region5: #{tpu_custom_call.1} parent=1 // loop_body
      %s22 = ssub.s32 %s17, 1
      %s23 = ssub.s32 %s17, 2
      %s24 = sadd.s32 %s17, 1
      %s26 = sadd.s32 %s25, 1
      %p29 = scmp.eq.s32.totalorder %s17, 1
      %p30 = scmp.ne.s32.totalorder %s25, %s27
      %p31 = scmp.eq.s32.totalorder %s17, 0
      %p32 = por %p30, %p31
      %p33 = scmp.ne.s32.totalorder %s25, %s27
      %p34 = scmp.eq.s32.totalorder %s22, 1
      %p35 = por %p33, %p34
      %p36 = scmp.ne.s32.totalorder %s27, %s28
      %p37 = scmp.eq.s32.totalorder %s22, 0
      %p38 = por %p36, %p37
      %p39 = scmp.ne.s32.totalorder %s27, %s28
      %p40 = scmp.eq.s32.totalorder %s23, 1
      %p41 = por %p39, %p40
      %p43 = scmp.ne.s32.totalorder %s28, %s42
      %p44 = scmp.eq.s32.totalorder %s23, 0
      %p45 = por %p43, %p44
      %s47 = sadd.s32 %s46, 1
      %p50 = scmp.eq.s32.totalorder %s17, 1
      %p51 = scmp.ne.s32.totalorder %s46, %s48
      %p52 = scmp.eq.s32.totalorder %s17, 0
      %p53 = por %p51, %p52
      %p54 = scmp.ne.s32.totalorder %s46, %s48
      %p55 = scmp.eq.s32.totalorder %s22, 1
      %p56 = por %p54, %p55
      %p57 = scmp.ne.s32.totalorder %s48, %s49
      %p58 = scmp.eq.s32.totalorder %s22, 0
      %p59 = por %p57, %p58
      %p60 = scmp.ne.s32.totalorder %s48, %s49
      %p61 = scmp.eq.s32.totalorder %s23, 1
      %p62 = por %p60, %p61
      %p64 = scmp.ne.s32.totalorder %s49, %s63
      %p65 = scmp.eq.s32.totalorder %s23, 0
      %p66 = por %p64, %p65
      %s67 = ssub.s32 %s17, %s24
      %p68 = scmp.eq.s32.totalorder %s67, 0
      %s70 = sadd.s32 %s69, 1
      %s71 = scalar_select %p68, %s69, %s70
      %p74 = pneg %p68
      %p75 = scmp.eq.s32.totalorder %s17, 1
      %p76 = por %p74, %p75
      %p77 = scmp.ne.s32.totalorder %s69, %s72
      %p78 = scmp.eq.s32.totalorder %s17, 0
      %p79 = por %p77, %p78
      %p80 = scmp.ne.s32.totalorder %s69, %s72
      %p81 = scmp.eq.s32.totalorder %s22, 1
      %p82 = por %p80, %p81
      %p83 = scmp.ne.s32.totalorder %s72, %s73
      %p84 = scmp.eq.s32.totalorder %s22, 0
      %p85 = por %p83, %p84
      %p86 = scmp.ne.s32.totalorder %s72, %s73
      %p87 = scmp.eq.s32.totalorder %s23, 1
      %p88 = por %p86, %p87
      %p90 = scmp.ne.s32.totalorder %s73, %s89
      %p91 = scmp.eq.s32.totalorder %s23, 0
      %p92 = por %p90, %p91
      %s93 = ssub.s32 %s17, %s24
      %p94 = scmp.eq.s32.totalorder %s93, 0
      %s96 = sadd.s32 %s95, 1
      %s97 = scalar_select %p94, %s95, %s96
      %p100 = pneg %p94
      %p101 = scmp.eq.s32.totalorder %s17, 1
      %p102 = por %p100, %p101
      %p103 = scmp.ne.s32.totalorder %s95, %s98
      %p104 = scmp.eq.s32.totalorder %s17, 0
      %p105 = por %p103, %p104
      %p106 = scmp.ne.s32.totalorder %s95, %s98
      %p107 = scmp.eq.s32.totalorder %s22, 1
      %p108 = por %p106, %p107
      %p109 = scmp.ne.s32.totalorder %s98, %s99
      %p110 = scmp.eq.s32.totalorder %s22, 0
      %p111 = por %p109, %p110
      %p112 = scmp.ne.s32.totalorder %s98, %s99
      %p113 = scmp.eq.s32.totalorder %s23, 1
      %p114 = por %p112, %p113
      %p116 = scmp.ne.s32.totalorder %s99, %s115
      %p117 = scmp.eq.s32.totalorder %s23, 0
      %p118 = por %p116, %p117
      %p119 = scmp.le.s32.totalorder 1, %s17
      %p120 = scmp.lt.s32.totalorder %s17, 3
      %p121 = pnand %p119, %p120
      %p122 = pneg %p121
      // Predicated region
      $region9: #{tpu_custom_call.1} parent=5 // pred_check
        _
      $region10: #{tpu_custom_call.1} parent=5 // pred_check_branch
        %124 = sbr.rel (%p121) target = $region12
      $region11: #{tpu_custom_call.1} parent=5 // pred_region
        %s125 = ssub.s32 %s17, 1
        // Predicated region
        $region13: #{tpu_custom_call.1} parent=11 // pred_check
          %p126 = pneg %p38
        $region14: #{tpu_custom_call.1} parent=11 // pred_check_branch
          %128 = sbr.rel (%p126) target = $region16
        $region15: #{tpu_custom_call.1} parent=11 // pred_region
          %s130 = ssub.s32 16, 16
          %131 = vsyncadd [#allocation6], %s130
          %134 = dma.hbm_to_smem %s0, 16, [#allocation3], [#allocation6]
        $region16: #{tpu_custom_call.1} parent=11 // pred_fallthru
          _
        // Predicated region
        $region17: #{tpu_custom_call.1} parent=11 // pred_check
          %p135 = pneg %p59
        $region18: #{tpu_custom_call.1} parent=11 // pred_check_branch
          %137 = sbr.rel (%p135) target = $region20
        $region19: #{tpu_custom_call.1} parent=11 // pred_region
          _
        $region20: #{tpu_custom_call.1} parent=11 // pred_fallthru
          _
      $region12: #{tpu_custom_call.1} parent=5 // pred_fallthru
        _
      %p138 = scmp.lt.s32.totalorder %s17, 2
      // Predicated region
      $region21: #{tpu_custom_call.1} parent=5 // pred_check
        %p139 = pneg %p138
      $region22: #{tpu_custom_call.1} parent=5 // pred_check_branch
        %141 = sbr.rel (%p139) target = $region24
      $region23: #{tpu_custom_call.1} parent=5 // pred_region
        // Predicated region
        $region25: #{tpu_custom_call.1} parent=23 // pred_check
          %p142 = pneg %p79
        $region26: #{tpu_custom_call.1} parent=23 // pred_check_branch
          %144 = sbr.rel (%p142) target = $region28
        $region27: #{tpu_custom_call.1} parent=23 // pred_region
          %s145 = sand.u32 %s69, 1
          %s146 = scalar_lea.sflag [#allocation4], %s145
          %s147 = sand.u32 %s69, 1
          %s148 = smul.addr %s147, 1920
          %s149 = scalar_lea.vmem [#allocation7], %s148
          %s151 = ssub.s32 30720, 30720
          %152 = vsyncadd %s146, %s151
          %s153 = smul.addr %s17, 240
          %s154 = smul.addr %s153, 128
          %s155 = scalar_lea.hbm %s2, %s154
          %s156 = sshll.u32 %s149, 4
          %s157 = int_to_ptr.vmem [resolvable:$true] %s156
          %162 = dma.hbm_to_vmem [thread:$0]  %s155, 30720, %s157, %s146, 768, 768, 48
        $region28: #{tpu_custom_call.1} parent=23 // pred_fallthru
          _
      $region24: #{tpu_custom_call.1} parent=5 // pred_fallthru
        _
      %p163 = scmp.le.s32.totalorder 1, %s17
      %p164 = scmp.lt.s32.totalorder %s17, 3
      %p165 = pnand %p163, %p164
      %p166 = pneg %p165
      // Predicated region
      $region29: #{tpu_custom_call.1} parent=5 // pred_check
        _
      $region30: #{tpu_custom_call.1} parent=5 // pred_check_branch
        %168 = sbr.rel (%p165) target = $region32
      $region31: #{tpu_custom_call.1} parent=5 // pred_region
        %s169 = ssub.s32 %s17, 1
        // Predicated region
        $region33: #{tpu_custom_call.1} parent=31 // pred_check
          %p170 = pneg %p38
        $region34: #{tpu_custom_call.1} parent=31 // pred_check_branch
          %172 = sbr.rel (%p170) target = $region36
        $region35: #{tpu_custom_call.1} parent=31 // pred_region
          %173 = dma.done [#allocation6], 16
        $region36: #{tpu_custom_call.1} parent=31 // pred_fallthru
          _
        %s174 = sand.u32 %s72, 1
        %s175 = scalar_lea.sflag [#allocation4], %s174
        %s176 = sand.u32 %s72, 1
        %s177 = smul.addr %s176, 1920
        %s178 = scalar_lea.vmem [#allocation7], %s177
        // Predicated region
        $region37: #{tpu_custom_call.1} parent=31 // pred_check
          %p179 = pneg %p85
        $region38: #{tpu_custom_call.1} parent=31 // pred_check_branch
          %181 = sbr.rel (%p179) target = $region40
        $region39: #{tpu_custom_call.1} parent=31 // pred_region
          %182 = dma.done %s175, 30720
        $region40: #{tpu_custom_call.1} parent=31 // pred_fallthru
          _
        %183 = sfence
        %p184 = pneg %p38
        %p185 = pneg %p35
        %p186 = pneg %p59
        %p187 = pneg %p56
        %s188 = sand.u32 %s72, 1
        %s189 = scalar_lea.sflag [#allocation4], %s188
        %s190 = sand.u32 %s72, 1
        %s191 = smul.addr %s190, 1920
        %s192 = scalar_lea.vmem [#allocation7], %s191
        %p193 = pneg %p85
        %p194 = pneg %p82
        %p195 = pneg %p111
        %p196 = pneg %p108
        %s197 = sand.u32 %s98, 1
        %s198 = scalar_lea.sflag [#allocation5], %s197
        %s199 = sand.u32 %s98, 1
        %s200 = smul.addr %s199, 1920
        %s201 = scalar_lea.vmem [#allocation8], %s200
        %v202 = vld [vmem:[%s178] sm:$0xff]
        %v203 = vld [vmem:[%s178 + $0x8] sm:$0xff]
        %v204 = vld [vmem:[%s178 + $0x10] sm:$0xff]
        %v205 = vld [vmem:[%s178 + $0x18] sm:$0xff]
        %v206 = vld [vmem:[%s178 + $0x20] sm:$0xff]
        %v207 = vld [vmem:[%s178 + $0x28] sm:$0xff]
        %v208 = vld [vmem:[%s178 + $0x30] sm:$0xff]
        %v209 = vld [vmem:[%s178 + $0x38] sm:$0xff]
        %v210 = vld [vmem:[%s178 + $0x40] sm:$0xff]
        %v211 = vld [vmem:[%s178 + $0x48] sm:$0xff]
        %v212 = vld [vmem:[%s178 + $0x50] sm:$0xff]
        %v213 = vld [vmem:[%s178 + $0x58] sm:$0xff]
        %v214 = vld [vmem:[%s178 + $0x60] sm:$0xff]
        %v215 = vld [vmem:[%s178 + $0x68] sm:$0xff]
        %v216 = vld [vmem:[%s178 + $0x70] sm:$0xff]
        %v217 = vld [vmem:[%s178 + $0x78] sm:$0xff]
        %v218 = vld [vmem:[%s178 + $0x80] sm:$0xff]
        %v219 = vld [vmem:[%s178 + $0x88] sm:$0xff]
        %v220 = vld [vmem:[%s178 + $0x90] sm:$0xff]
        %v221 = vld [vmem:[%s178 + $0x98] sm:$0xff]
        %v222 = vld [vmem:[%s178 + $0xa0] sm:$0xff]
        %v223 = vld [vmem:[%s178 + $0xa8] sm:$0xff]
        %v224 = vld [vmem:[%s178 + $0xb0] sm:$0xff]
        %v225 = vld [vmem:[%s178 + $0xb8] sm:$0xff]
        %v226 = vld [vmem:[%s178 + $0xc0] sm:$0xff]
        %v227 = vld [vmem:[%s178 + $0xc8] sm:$0xff]
        %v228 = vld [vmem:[%s178 + $0xd0] sm:$0xff]
        %v229 = vld [vmem:[%s178 + $0xd8] sm:$0xff]
        %v230 = vld [vmem:[%s178 + $0xe0] sm:$0xff]
        %v231 = vld [vmem:[%s178 + $0xe8] sm:$0xff]
        %v232 = vld [vmem:[%s178 + $0xf0] sm:$0xff]
        %v233 = vld [vmem:[%s178 + $0xf8] sm:$0xff]
        %v234 = vld [vmem:[%s178 + $0x100] sm:$0xff]
        %v235 = vld [vmem:[%s178 + $0x108] sm:$0xff]
        %v236 = vld [vmem:[%s178 + $0x110] sm:$0xff]
        %v237 = vld [vmem:[%s178 + $0x118] sm:$0xff]
        %v238 = vld [vmem:[%s178 + $0x120] sm:$0xff]
        %v239 = vld [vmem:[%s178 + $0x128] sm:$0xff]
        %v240 = vld [vmem:[%s178 + $0x130] sm:$0xff]
        %v241 = vld [vmem:[%s178 + $0x138] sm:$0xff]
        %v242 = vld [vmem:[%s178 + $0x140] sm:$0xff]
        %v243 = vld [vmem:[%s178 + $0x148] sm:$0xff]
        %v244 = vld [vmem:[%s178 + $0x150] sm:$0xff]
        %v245 = vld [vmem:[%s178 + $0x158] sm:$0xff]
        %v246 = vld [vmem:[%s178 + $0x160] sm:$0xff]
        %v247 = vld [vmem:[%s178 + $0x168] sm:$0xff]
        %v248 = vld [vmem:[%s178 + $0x170] sm:$0xff]
        %v249 = vld [vmem:[%s178 + $0x178] sm:$0xff]
        %v250 = vld [vmem:[%s178 + $0x180] sm:$0xff]
        %v251 = vld [vmem:[%s178 + $0x188] sm:$0xff]
        %v252 = vld [vmem:[%s178 + $0x190] sm:$0xff]
        %v253 = vld [vmem:[%s178 + $0x198] sm:$0xff]
        %v254 = vld [vmem:[%s178 + $0x1a0] sm:$0xff]
        %v255 = vld [vmem:[%s178 + $0x1a8] sm:$0xff]
        %v256 = vld [vmem:[%s178 + $0x1b0] sm:$0xff]
        %v257 = vld [vmem:[%s178 + $0x1b8] sm:$0xff]
        %v258 = vld [vmem:[%s178 + $0x1c0] sm:$0xff]
        %v259 = vld [vmem:[%s178 + $0x1c8] sm:$0xff]
        %v260 = vld [vmem:[%s178 + $0x1d0] sm:$0xff]
        %v261 = vld [vmem:[%s178 + $0x1d8] sm:$0xff]
        %v262 = vld [vmem:[%s178 + $0x1e0] sm:$0xff]
        %v263 = vld [vmem:[%s178 + $0x1e8] sm:$0xff]
        %v264 = vld [vmem:[%s178 + $0x1f0] sm:$0xff]
        %v265 = vld [vmem:[%s178 + $0x1f8] sm:$0xff]
        %v266 = vld [vmem:[%s178 + $0x200] sm:$0xff]
        %v267 = vld [vmem:[%s178 + $0x208] sm:$0xff]
        %v268 = vld [vmem:[%s178 + $0x210] sm:$0xff]
        %v269 = vld [vmem:[%s178 + $0x218] sm:$0xff]
        %v270 = vld [vmem:[%s178 + $0x220] sm:$0xff]
        %v271 = vld [vmem:[%s178 + $0x228] sm:$0xff]
        %v272 = vld [vmem:[%s178 + $0x230] sm:$0xff]
        %v273 = vld [vmem:[%s178 + $0x238] sm:$0xff]
        %v274 = vld [vmem:[%s178 + $0x240] sm:$0xff]
        %v275 = vld [vmem:[%s178 + $0x248] sm:$0xff]
        %v276 = vld [vmem:[%s178 + $0x250] sm:$0xff]
        %v277 = vld [vmem:[%s178 + $0x258] sm:$0xff]
        %v278 = vld [vmem:[%s178 + $0x260] sm:$0xff]
        %v279 = vld [vmem:[%s178 + $0x268] sm:$0xff]
        %v280 = vld [vmem:[%s178 + $0x270] sm:$0xff]
        %v281 = vld [vmem:[%s178 + $0x278] sm:$0xff]
        %v282 = vld [vmem:[%s178 + $0x280] sm:$0xff]
        %v283 = vld [vmem:[%s178 + $0x288] sm:$0xff]
        %v284 = vld [vmem:[%s178 + $0x290] sm:$0xff]
        %v285 = vld [vmem:[%s178 + $0x298] sm:$0xff]
        %v286 = vld [vmem:[%s178 + $0x2a0] sm:$0xff]
        %v287 = vld [vmem:[%s178 + $0x2a8] sm:$0xff]
        %v288 = vld [vmem:[%s178 + $0x2b0] sm:$0xff]
        %v289 = vld [vmem:[%s178 + $0x2b8] sm:$0xff]
        %v290 = vld [vmem:[%s178 + $0x2c0] sm:$0xff]
        %v291 = vld [vmem:[%s178 + $0x2c8] sm:$0xff]
        %v292 = vld [vmem:[%s178 + $0x2d0] sm:$0xff]
        %v293 = vld [vmem:[%s178 + $0x2d8] sm:$0xff]
        %v294 = vld [vmem:[%s178 + $0x2e0] sm:$0xff]
        %v295 = vld [vmem:[%s178 + $0x2e8] sm:$0xff]
        %v296 = vld [vmem:[%s178 + $0x2f0] sm:$0xff]
        %v297 = vld [vmem:[%s178 + $0x2f8] sm:$0xff]
        %v298 = vld [vmem:[%s178 + $0x300] sm:$0xff]
        %v299 = vld [vmem:[%s178 + $0x308] sm:$0xff]
        %v300 = vld [vmem:[%s178 + $0x310] sm:$0xff]
        %v301 = vld [vmem:[%s178 + $0x318] sm:$0xff]
        %v302 = vld [vmem:[%s178 + $0x320] sm:$0xff]
        %v303 = vld [vmem:[%s178 + $0x328] sm:$0xff]
        %v304 = vld [vmem:[%s178 + $0x330] sm:$0xff]
        %v305 = vld [vmem:[%s178 + $0x338] sm:$0xff]
        %v306 = vld [vmem:[%s178 + $0x340] sm:$0xff]
        %v307 = vld [vmem:[%s178 + $0x348] sm:$0xff]
        %v308 = vld [vmem:[%s178 + $0x350] sm:$0xff]
        %v309 = vld [vmem:[%s178 + $0x358] sm:$0xff]
        %v310 = vld [vmem:[%s178 + $0x360] sm:$0xff]
        %v311 = vld [vmem:[%s178 + $0x368] sm:$0xff]
        %v312 = vld [vmem:[%s178 + $0x370] sm:$0xff]
        %v313 = vld [vmem:[%s178 + $0x378] sm:$0xff]
        %v314 = vld [vmem:[%s178 + $0x380] sm:$0xff]
        %v315 = vld [vmem:[%s178 + $0x388] sm:$0xff]
        %v316 = vld [vmem:[%s178 + $0x390] sm:$0xff]
        %v317 = vld [vmem:[%s178 + $0x398] sm:$0xff]
        %v318 = vld [vmem:[%s178 + $0x3a0] sm:$0xff]
        %v319 = vld [vmem:[%s178 + $0x3a8] sm:$0xff]
        %v320 = vld [vmem:[%s178 + $0x3b0] sm:$0xff]
        %v321 = vld [vmem:[%s178 + $0x3b8] sm:$0xff]
        %v322 = vld [vmem:[%s178 + $0x3c0] sm:$0xff]
        %v323 = vld [vmem:[%s178 + $0x3c8] sm:$0xff]
        %v324 = vld [vmem:[%s178 + $0x3d0] sm:$0xff]
        %v325 = vld [vmem:[%s178 + $0x3d8] sm:$0xff]
        %v326 = vld [vmem:[%s178 + $0x3e0] sm:$0xff]
        %v327 = vld [vmem:[%s178 + $0x3e8] sm:$0xff]
        %v328 = vld [vmem:[%s178 + $0x3f0] sm:$0xff]
        %v329 = vld [vmem:[%s178 + $0x3f8] sm:$0xff]
        %v330 = vld [vmem:[%s178 + $0x400] sm:$0xff]
        %v331 = vld [vmem:[%s178 + $0x408] sm:$0xff]
        %v332 = vld [vmem:[%s178 + $0x410] sm:$0xff]
        %v333 = vld [vmem:[%s178 + $0x418] sm:$0xff]
        %v334 = vld [vmem:[%s178 + $0x420] sm:$0xff]
        %v335 = vld [vmem:[%s178 + $0x428] sm:$0xff]
        %v336 = vld [vmem:[%s178 + $0x430] sm:$0xff]
        %v337 = vld [vmem:[%s178 + $0x438] sm:$0xff]
        %v338 = vld [vmem:[%s178 + $0x440] sm:$0xff]
        %v339 = vld [vmem:[%s178 + $0x448] sm:$0xff]
        %v340 = vld [vmem:[%s178 + $0x450] sm:$0xff]
        %v341 = vld [vmem:[%s178 + $0x458] sm:$0xff]
        %v342 = vld [vmem:[%s178 + $0x460] sm:$0xff]
        %v343 = vld [vmem:[%s178 + $0x468] sm:$0xff]
        %v344 = vld [vmem:[%s178 + $0x470] sm:$0xff]
        %v345 = vld [vmem:[%s178 + $0x478] sm:$0xff]
        %v346 = vld [vmem:[%s178 + $0x480] sm:$0xff]
        %v347 = vld [vmem:[%s178 + $0x488] sm:$0xff]
        %v348 = vld [vmem:[%s178 + $0x490] sm:$0xff]
        %v349 = vld [vmem:[%s178 + $0x498] sm:$0xff]
        %v350 = vld [vmem:[%s178 + $0x4a0] sm:$0xff]
        %v351 = vld [vmem:[%s178 + $0x4a8] sm:$0xff]
        %v352 = vld [vmem:[%s178 + $0x4b0] sm:$0xff]
        %v353 = vld [vmem:[%s178 + $0x4b8] sm:$0xff]
        %v354 = vld [vmem:[%s178 + $0x4c0] sm:$0xff]
        %v355 = vld [vmem:[%s178 + $0x4c8] sm:$0xff]
        %v356 = vld [vmem:[%s178 + $0x4d0] sm:$0xff]
        %v357 = vld [vmem:[%s178 + $0x4d8] sm:$0xff]
        %v358 = vld [vmem:[%s178 + $0x4e0] sm:$0xff]
        %v359 = vld [vmem:[%s178 + $0x4e8] sm:$0xff]
        %v360 = vld [vmem:[%s178 + $0x4f0] sm:$0xff]
        %v361 = vld [vmem:[%s178 + $0x4f8] sm:$0xff]
        %v362 = vld [vmem:[%s178 + $0x500] sm:$0xff]
        %v363 = vld [vmem:[%s178 + $0x508] sm:$0xff]
        %v364 = vld [vmem:[%s178 + $0x510] sm:$0xff]
        %v365 = vld [vmem:[%s178 + $0x518] sm:$0xff]
        %v366 = vld [vmem:[%s178 + $0x520] sm:$0xff]
        %v367 = vld [vmem:[%s178 + $0x528] sm:$0xff]
        %v368 = vld [vmem:[%s178 + $0x530] sm:$0xff]
        %v369 = vld [vmem:[%s178 + $0x538] sm:$0xff]
        %v370 = vld [vmem:[%s178 + $0x540] sm:$0xff]
        %v371 = vld [vmem:[%s178 + $0x548] sm:$0xff]
        %v372 = vld [vmem:[%s178 + $0x550] sm:$0xff]
        %v373 = vld [vmem:[%s178 + $0x558] sm:$0xff]
        %v374 = vld [vmem:[%s178 + $0x560] sm:$0xff]
        %v375 = vld [vmem:[%s178 + $0x568] sm:$0xff]
        %v376 = vld [vmem:[%s178 + $0x570] sm:$0xff]
        %v377 = vld [vmem:[%s178 + $0x578] sm:$0xff]
        %v378 = vld [vmem:[%s178 + $0x580] sm:$0xff]
        %v379 = vld [vmem:[%s178 + $0x588] sm:$0xff]
        %v380 = vld [vmem:[%s178 + $0x590] sm:$0xff]
        %v381 = vld [vmem:[%s178 + $0x598] sm:$0xff]
        %v382 = vld [vmem:[%s178 + $0x5a0] sm:$0xff]
        %v383 = vld [vmem:[%s178 + $0x5a8] sm:$0xff]
        %v384 = vld [vmem:[%s178 + $0x5b0] sm:$0xff]
        %v385 = vld [vmem:[%s178 + $0x5b8] sm:$0xff]
        %v386 = vld [vmem:[%s178 + $0x5c0] sm:$0xff]
        %v387 = vld [vmem:[%s178 + $0x5c8] sm:$0xff]
        %v388 = vld [vmem:[%s178 + $0x5d0] sm:$0xff]
        %v389 = vld [vmem:[%s178 + $0x5d8] sm:$0xff]
        %v390 = vld [vmem:[%s178 + $0x5e0] sm:$0xff]
        %v391 = vld [vmem:[%s178 + $0x5e8] sm:$0xff]
        %v392 = vld [vmem:[%s178 + $0x5f0] sm:$0xff]
        %v393 = vld [vmem:[%s178 + $0x5f8] sm:$0xff]
        %v394 = vld [vmem:[%s178 + $0x600] sm:$0xff]
        %v395 = vld [vmem:[%s178 + $0x608] sm:$0xff]
        %v396 = vld [vmem:[%s178 + $0x610] sm:$0xff]
        %v397 = vld [vmem:[%s178 + $0x618] sm:$0xff]
        %v398 = vld [vmem:[%s178 + $0x620] sm:$0xff]
        %v399 = vld [vmem:[%s178 + $0x628] sm:$0xff]
        %v400 = vld [vmem:[%s178 + $0x630] sm:$0xff]
        %v401 = vld [vmem:[%s178 + $0x638] sm:$0xff]
        %v402 = vld [vmem:[%s178 + $0x640] sm:$0xff]
        %v403 = vld [vmem:[%s178 + $0x648] sm:$0xff]
        %v404 = vld [vmem:[%s178 + $0x650] sm:$0xff]
        %v405 = vld [vmem:[%s178 + $0x658] sm:$0xff]
        %v406 = vld [vmem:[%s178 + $0x660] sm:$0xff]
        %v407 = vld [vmem:[%s178 + $0x668] sm:$0xff]
        %v408 = vld [vmem:[%s178 + $0x670] sm:$0xff]
        %v409 = vld [vmem:[%s178 + $0x678] sm:$0xff]
        %v410 = vld [vmem:[%s178 + $0x680] sm:$0xff]
        %v411 = vld [vmem:[%s178 + $0x688] sm:$0xff]
        %v412 = vld [vmem:[%s178 + $0x690] sm:$0xff]
        %v413 = vld [vmem:[%s178 + $0x698] sm:$0xff]
        %v414 = vld [vmem:[%s178 + $0x6a0] sm:$0xff]
        %v415 = vld [vmem:[%s178 + $0x6a8] sm:$0xff]
        %v416 = vld [vmem:[%s178 + $0x6b0] sm:$0xff]
        %v417 = vld [vmem:[%s178 + $0x6b8] sm:$0xff]
        %v418 = vld [vmem:[%s178 + $0x6c0] sm:$0xff]
        %v419 = vld [vmem:[%s178 + $0x6c8] sm:$0xff]
        %v420 = vld [vmem:[%s178 + $0x6d0] sm:$0xff]
        %v421 = vld [vmem:[%s178 + $0x6d8] sm:$0xff]
        %v422 = vld [vmem:[%s178 + $0x6e0] sm:$0xff]
        %v423 = vld [vmem:[%s178 + $0x6e8] sm:$0xff]
        %v424 = vld [vmem:[%s178 + $0x6f0] sm:$0xff]
        %v425 = vld [vmem:[%s178 + $0x6f8] sm:$0xff]
        %v426 = vld [vmem:[%s178 + $0x700] sm:$0xff]
        %v427 = vld [vmem:[%s178 + $0x708] sm:$0xff]
        %v428 = vld [vmem:[%s178 + $0x710] sm:$0xff]
        %v429 = vld [vmem:[%s178 + $0x718] sm:$0xff]
        %v430 = vld [vmem:[%s178 + $0x720] sm:$0xff]
        %v431 = vld [vmem:[%s178 + $0x728] sm:$0xff]
        %v432 = vld [vmem:[%s178 + $0x730] sm:$0xff]
        %v433 = vld [vmem:[%s178 + $0x738] sm:$0xff]
        %v434 = vld [vmem:[%s178 + $0x740] sm:$0xff]
        %v435 = vld [vmem:[%s178 + $0x748] sm:$0xff]
        %v436 = vld [vmem:[%s178 + $0x750] sm:$0xff]
        %v437 = vld [vmem:[%s178 + $0x758] sm:$0xff]
        %v438 = vld [vmem:[%s178 + $0x760] sm:$0xff]
        %v439 = vld [vmem:[%s178 + $0x768] sm:$0xff]
        %v440 = vld [vmem:[%s178 + $0x770] sm:$0xff]
        %v441 = vld [vmem:[%s178 + $0x778] sm:$0xff]
        %v442 = vmax.f32 %v202, %v203
        %v443 = vmax.f32 %v442, %v204
        %v444 = vmax.f32 %v443, %v205
        %v445 = vmax.f32 %v444, %v206
        %v446 = vmax.f32 %v445, %v207
        %447 = vmax.xlane.f32.xlu0 %v446
        %v448 = vpop.xlane.xlu0 %447
        %v449 = vmax.f32 %v208, %v209
        %v450 = vmax.f32 %v449, %v210
        %v451 = vmax.f32 %v450, %v211
        %v452 = vmax.f32 %v451, %v212
        %v453 = vmax.f32 %v452, %v213
        %454 = vmax.xlane.f32.xlu0 %v453
        %v455 = vpop.xlane.xlu0 %454
        %v456 = vmax.f32 %v214, %v215
        %v457 = vmax.f32 %v456, %v216
        %v458 = vmax.f32 %v457, %v217
        %v459 = vmax.f32 %v458, %v218
        %v460 = vmax.f32 %v459, %v219
        %461 = vmax.xlane.f32.xlu0 %v460
        %v462 = vpop.xlane.xlu0 %461
        %v463 = vmax.f32 %v220, %v221
        %v464 = vmax.f32 %v463, %v222
        %v465 = vmax.f32 %v464, %v223
        %v466 = vmax.f32 %v465, %v224
        %v467 = vmax.f32 %v466, %v225
        %468 = vmax.xlane.f32.xlu0 %v467
        %v469 = vpop.xlane.xlu0 %468
        %v470 = vmax.f32 %v226, %v227
        %v471 = vmax.f32 %v470, %v228
        %v472 = vmax.f32 %v471, %v229
        %v473 = vmax.f32 %v472, %v230
        %v474 = vmax.f32 %v473, %v231
        %475 = vmax.xlane.f32.xlu0 %v474
        %v476 = vpop.xlane.xlu0 %475
        %v477 = vmax.f32 %v232, %v233
        %v478 = vmax.f32 %v477, %v234
        %v479 = vmax.f32 %v478, %v235
        %v480 = vmax.f32 %v479, %v236
        %v481 = vmax.f32 %v480, %v237
        %482 = vmax.xlane.f32.xlu0 %v481
        %v483 = vpop.xlane.xlu0 %482
        %v484 = vmax.f32 %v238, %v239
        %v485 = vmax.f32 %v484, %v240
        %v486 = vmax.f32 %v485, %v241
        %v487 = vmax.f32 %v486, %v242
        %v488 = vmax.f32 %v487, %v243
        %489 = vmax.xlane.f32.xlu0 %v488
        %v490 = vpop.xlane.xlu0 %489
        %v491 = vmax.f32 %v244, %v245
        %v492 = vmax.f32 %v491, %v246
        %v493 = vmax.f32 %v492, %v247
        %v494 = vmax.f32 %v493, %v248
        %v495 = vmax.f32 %v494, %v249
        %496 = vmax.xlane.f32.xlu0 %v495
        %v497 = vpop.xlane.xlu0 %496
        %v498 = vmax.f32 %v250, %v251
        %v499 = vmax.f32 %v498, %v252
        %v500 = vmax.f32 %v499, %v253
        %v501 = vmax.f32 %v500, %v254
        %v502 = vmax.f32 %v501, %v255
        %503 = vmax.xlane.f32.xlu0 %v502
        %v504 = vpop.xlane.xlu0 %503
        %v505 = vmax.f32 %v256, %v257
        %v506 = vmax.f32 %v505, %v258
        %v507 = vmax.f32 %v506, %v259
        %v508 = vmax.f32 %v507, %v260
        %v509 = vmax.f32 %v508, %v261
        %510 = vmax.xlane.f32.xlu0 %v509
        %v511 = vpop.xlane.xlu0 %510
        %v512 = vmax.f32 %v262, %v263
        %v513 = vmax.f32 %v512, %v264
        %v514 = vmax.f32 %v513, %v265
        %v515 = vmax.f32 %v514, %v266
        %v516 = vmax.f32 %v515, %v267
        %517 = vmax.xlane.f32.xlu0 %v516
        %v518 = vpop.xlane.xlu0 %517
        %v519 = vmax.f32 %v268, %v269
        %v520 = vmax.f32 %v519, %v270
        %v521 = vmax.f32 %v520, %v271
        %v522 = vmax.f32 %v521, %v272
        %v523 = vmax.f32 %v522, %v273
        %524 = vmax.xlane.f32.xlu0 %v523
        %v525 = vpop.xlane.xlu0 %524
        %v526 = vmax.f32 %v274, %v275
        %v527 = vmax.f32 %v526, %v276
        %v528 = vmax.f32 %v527, %v277
        %v529 = vmax.f32 %v528, %v278
        %v530 = vmax.f32 %v529, %v279
        %531 = vmax.xlane.f32.xlu0 %v530
        %v532 = vpop.xlane.xlu0 %531
        %v533 = vmax.f32 %v280, %v281
        %v534 = vmax.f32 %v533, %v282
        %v535 = vmax.f32 %v534, %v283
        %v536 = vmax.f32 %v535, %v284
        %v537 = vmax.f32 %v536, %v285
        %538 = vmax.xlane.f32.xlu0 %v537
        %v539 = vpop.xlane.xlu0 %538
        %v540 = vmax.f32 %v286, %v287
        %v541 = vmax.f32 %v540, %v288
        %v542 = vmax.f32 %v541, %v289
        %v543 = vmax.f32 %v542, %v290
        %v544 = vmax.f32 %v543, %v291
        %545 = vmax.xlane.f32.xlu0 %v544
        %v546 = vpop.xlane.xlu0 %545
        %v547 = vmax.f32 %v292, %v293
        %v548 = vmax.f32 %v547, %v294
        %v549 = vmax.f32 %v548, %v295
        %v550 = vmax.f32 %v549, %v296
        %v551 = vmax.f32 %v550, %v297
        %552 = vmax.xlane.f32.xlu0 %v551
        %v553 = vpop.xlane.xlu0 %552
        %v554 = vmax.f32 %v298, %v299
        %v555 = vmax.f32 %v554, %v300
        %v556 = vmax.f32 %v555, %v301
        %v557 = vmax.f32 %v556, %v302
        %v558 = vmax.f32 %v557, %v303
        %559 = vmax.xlane.f32.xlu0 %v558
        %v560 = vpop.xlane.xlu0 %559
        %v561 = vmax.f32 %v304, %v305
        %v562 = vmax.f32 %v561, %v306
        %v563 = vmax.f32 %v562, %v307
        %v564 = vmax.f32 %v563, %v308
        %v565 = vmax.f32 %v564, %v309
        %566 = vmax.xlane.f32.xlu0 %v565
        %v567 = vpop.xlane.xlu0 %566
        %v568 = vmax.f32 %v310, %v311
        %v569 = vmax.f32 %v568, %v312
        %v570 = vmax.f32 %v569, %v313
        %v571 = vmax.f32 %v570, %v314
        %v572 = vmax.f32 %v571, %v315
        %573 = vmax.xlane.f32.xlu0 %v572
        %v574 = vpop.xlane.xlu0 %573
        %v575 = vmax.f32 %v316, %v317
        %v576 = vmax.f32 %v575, %v318
        %v577 = vmax.f32 %v576, %v319
        %v578 = vmax.f32 %v577, %v320
        %v579 = vmax.f32 %v578, %v321
        %580 = vmax.xlane.f32.xlu0 %v579
        %v581 = vpop.xlane.xlu0 %580
        %v582 = vmax.f32 %v322, %v323
        %v583 = vmax.f32 %v582, %v324
        %v584 = vmax.f32 %v583, %v325
        %v585 = vmax.f32 %v584, %v326
        %v586 = vmax.f32 %v585, %v327
        %587 = vmax.xlane.f32.xlu0 %v586
        %v588 = vpop.xlane.xlu0 %587
        %v589 = vmax.f32 %v328, %v329
        %v590 = vmax.f32 %v589, %v330
        %v591 = vmax.f32 %v590, %v331
        %v592 = vmax.f32 %v591, %v332
        %v593 = vmax.f32 %v592, %v333
        %594 = vmax.xlane.f32.xlu0 %v593
        %v595 = vpop.xlane.xlu0 %594
        %v596 = vmax.f32 %v334, %v335
        %v597 = vmax.f32 %v596, %v336
        %v598 = vmax.f32 %v597, %v337
        %v599 = vmax.f32 %v598, %v338
        %v600 = vmax.f32 %v599, %v339
        %601 = vmax.xlane.f32.xlu0 %v600
        %v602 = vpop.xlane.xlu0 %601
        %v603 = vmax.f32 %v340, %v341
        %v604 = vmax.f32 %v603, %v342
        %v605 = vmax.f32 %v604, %v343
        %v606 = vmax.f32 %v605, %v344
        %v607 = vmax.f32 %v606, %v345
        %608 = vmax.xlane.f32.xlu0 %v607
        %v609 = vpop.xlane.xlu0 %608
        %v610 = vmax.f32 %v346, %v347
        %v611 = vmax.f32 %v610, %v348
        %v612 = vmax.f32 %v611, %v349
        %v613 = vmax.f32 %v612, %v350
        %v614 = vmax.f32 %v613, %v351
        %615 = vmax.xlane.f32.xlu0 %v614
        %v616 = vpop.xlane.xlu0 %615
        %v617 = vmax.f32 %v352, %v353
        %v618 = vmax.f32 %v617, %v354
        %v619 = vmax.f32 %v618, %v355
        %v620 = vmax.f32 %v619, %v356
        %v621 = vmax.f32 %v620, %v357
        %622 = vmax.xlane.f32.xlu0 %v621
        %v623 = vpop.xlane.xlu0 %622
        %v624 = vmax.f32 %v358, %v359
        %v625 = vmax.f32 %v624, %v360
        %v626 = vmax.f32 %v625, %v361
        %v627 = vmax.f32 %v626, %v362
        %v628 = vmax.f32 %v627, %v363
        %629 = vmax.xlane.f32.xlu0 %v628
        %v630 = vpop.xlane.xlu0 %629
        %v631 = vmax.f32 %v364, %v365
        %v632 = vmax.f32 %v631, %v366
        %v633 = vmax.f32 %v632, %v367
        %v634 = vmax.f32 %v633, %v368
        %v635 = vmax.f32 %v634, %v369
        %636 = vmax.xlane.f32.xlu0 %v635
        %v637 = vpop.xlane.xlu0 %636
        %v638 = vmax.f32 %v370, %v371
        %v639 = vmax.f32 %v638, %v372
        %v640 = vmax.f32 %v639, %v373
        %v641 = vmax.f32 %v640, %v374
        %v642 = vmax.f32 %v641, %v375
        %643 = vmax.xlane.f32.xlu0 %v642
        %v644 = vpop.xlane.xlu0 %643
        %v645 = vmax.f32 %v376, %v377
        %v646 = vmax.f32 %v645, %v378
        %v647 = vmax.f32 %v646, %v379
        %v648 = vmax.f32 %v647, %v380
        %v649 = vmax.f32 %v648, %v381
        %650 = vmax.xlane.f32.xlu0 %v649
        %v651 = vpop.xlane.xlu0 %650
        %v652 = vmax.f32 %v382, %v383
        %v653 = vmax.f32 %v652, %v384
        %v654 = vmax.f32 %v653, %v385
        %v655 = vmax.f32 %v654, %v386
        %v656 = vmax.f32 %v655, %v387
        %657 = vmax.xlane.f32.xlu0 %v656
        %v658 = vpop.xlane.xlu0 %657
        %v659 = vmax.f32 %v388, %v389
        %v660 = vmax.f32 %v659, %v390
        %v661 = vmax.f32 %v660, %v391
        %v662 = vmax.f32 %v661, %v392
        %v663 = vmax.f32 %v662, %v393
        %664 = vmax.xlane.f32.xlu0 %v663
        %v665 = vpop.xlane.xlu0 %664
        %v666 = vmax.f32 %v394, %v395
        %v667 = vmax.f32 %v666, %v396
        %v668 = vmax.f32 %v667, %v397
        %v669 = vmax.f32 %v668, %v398
        %v670 = vmax.f32 %v669, %v399
        %671 = vmax.xlane.f32.xlu0 %v670
        %v672 = vpop.xlane.xlu0 %671
        %v673 = vmax.f32 %v400, %v401
        %v674 = vmax.f32 %v673, %v402
        %v675 = vmax.f32 %v674, %v403
        %v676 = vmax.f32 %v675, %v404
        %v677 = vmax.f32 %v676, %v405
        %678 = vmax.xlane.f32.xlu0 %v677
        %v679 = vpop.xlane.xlu0 %678
        %v680 = vmax.f32 %v406, %v407
        %v681 = vmax.f32 %v680, %v408
        %v682 = vmax.f32 %v681, %v409
        %v683 = vmax.f32 %v682, %v410
        %v684 = vmax.f32 %v683, %v411
        %685 = vmax.xlane.f32.xlu0 %v684
        %v686 = vpop.xlane.xlu0 %685
        %v687 = vmax.f32 %v412, %v413
        %v688 = vmax.f32 %v687, %v414
        %v689 = vmax.f32 %v688, %v415
        %v690 = vmax.f32 %v689, %v416
        %v691 = vmax.f32 %v690, %v417
        %692 = vmax.xlane.f32.xlu0 %v691
        %v693 = vpop.xlane.xlu0 %692
        %v694 = vmax.f32 %v418, %v419
        %v695 = vmax.f32 %v694, %v420
        %v696 = vmax.f32 %v695, %v421
        %v697 = vmax.f32 %v696, %v422
        %v698 = vmax.f32 %v697, %v423
        %699 = vmax.xlane.f32.xlu0 %v698
        %v700 = vpop.xlane.xlu0 %699
        %v701 = vmax.f32 %v424, %v425
        %v702 = vmax.f32 %v701, %v426
        %v703 = vmax.f32 %v702, %v427
        %v704 = vmax.f32 %v703, %v428
        %v705 = vmax.f32 %v704, %v429
        %706 = vmax.xlane.f32.xlu0 %v705
        %v707 = vpop.xlane.xlu0 %706
        %v708 = vmax.f32 %v430, %v431
        %v709 = vmax.f32 %v708, %v432
        %v710 = vmax.f32 %v709, %v433
        %v711 = vmax.f32 %v710, %v434
        %v712 = vmax.f32 %v711, %v435
        %713 = vmax.xlane.f32.xlu0 %v712
        %v714 = vpop.xlane.xlu0 %713
        %v715 = vmax.f32 %v436, %v437
        %v716 = vmax.f32 %v715, %v438
        %v717 = vmax.f32 %v716, %v439
        %v718 = vmax.f32 %v717, %v440
        %v719 = vmax.f32 %v718, %v441
        %720 = vmax.xlane.f32.xlu0 %v719
        %v721 = vpop.xlane.xlu0 %720
        %v722 = vadd.f32 %v202, %v203
        %v723 = vadd.f32 %v722, %v204
        %v724 = vadd.f32 %v723, %v205
        %v725 = vadd.f32 %v724, %v206
        %v726 = vadd.f32 %v725, %v207
        %727 = vadd.xlane.f32.xlu0 %v726
        %v728 = vpop.xlane.xlu0 %727
        %v729 = vadd.f32 %v208, %v209
        %v730 = vadd.f32 %v729, %v210
        %v731 = vadd.f32 %v730, %v211
        %v732 = vadd.f32 %v731, %v212
        %v733 = vadd.f32 %v732, %v213
        %734 = vadd.xlane.f32.xlu0 %v733
        %v735 = vpop.xlane.xlu0 %734
        %v736 = vadd.f32 %v214, %v215
        %v737 = vadd.f32 %v736, %v216
        %v738 = vadd.f32 %v737, %v217
        %v739 = vadd.f32 %v738, %v218
        %v740 = vadd.f32 %v739, %v219
        %741 = vadd.xlane.f32.xlu0 %v740
        %v742 = vpop.xlane.xlu0 %741
        %v743 = vadd.f32 %v220, %v221
        %v744 = vadd.f32 %v743, %v222
        %v745 = vadd.f32 %v744, %v223
        %v746 = vadd.f32 %v745, %v224
        %v747 = vadd.f32 %v746, %v225
        %748 = vadd.xlane.f32.xlu0 %v747
        %v749 = vpop.xlane.xlu0 %748
        %v750 = vadd.f32 %v226, %v227
        %v751 = vadd.f32 %v750, %v228
        %v752 = vadd.f32 %v751, %v229
        %v753 = vadd.f32 %v752, %v230
        %v754 = vadd.f32 %v753, %v231
        %755 = vadd.xlane.f32.xlu0 %v754
        %v756 = vpop.xlane.xlu0 %755
        %v757 = vadd.f32 %v232, %v233
        %v758 = vadd.f32 %v757, %v234
        %v759 = vadd.f32 %v758, %v235
        %v760 = vadd.f32 %v759, %v236
        %v761 = vadd.f32 %v760, %v237
        %762 = vadd.xlane.f32.xlu0 %v761
        %v763 = vpop.xlane.xlu0 %762
        %v764 = vadd.f32 %v238, %v239
        %v765 = vadd.f32 %v764, %v240
        %v766 = vadd.f32 %v765, %v241
        %v767 = vadd.f32 %v766, %v242
        %v768 = vadd.f32 %v767, %v243
        %769 = vadd.xlane.f32.xlu0 %v768
        %v770 = vpop.xlane.xlu0 %769
        %v771 = vadd.f32 %v244, %v245
        %v772 = vadd.f32 %v771, %v246
        %v773 = vadd.f32 %v772, %v247
        %v774 = vadd.f32 %v773, %v248
        %v775 = vadd.f32 %v774, %v249
        %776 = vadd.xlane.f32.xlu0 %v775
        %v777 = vpop.xlane.xlu0 %776
        %v778 = vadd.f32 %v250, %v251
        %v779 = vadd.f32 %v778, %v252
        %v780 = vadd.f32 %v779, %v253
        %v781 = vadd.f32 %v780, %v254
        %v782 = vadd.f32 %v781, %v255
        %783 = vadd.xlane.f32.xlu0 %v782
        %v784 = vpop.xlane.xlu0 %783
        %v785 = vadd.f32 %v256, %v257
        %v786 = vadd.f32 %v785, %v258
        %v787 = vadd.f32 %v786, %v259
        %v788 = vadd.f32 %v787, %v260
        %v789 = vadd.f32 %v788, %v261
        %790 = vadd.xlane.f32.xlu0 %v789
        %v791 = vpop.xlane.xlu0 %790
        %v792 = vadd.f32 %v262, %v263
        %v793 = vadd.f32 %v792, %v264
        %v794 = vadd.f32 %v793, %v265
        %v795 = vadd.f32 %v794, %v266
        %v796 = vadd.f32 %v795, %v267
        %797 = vadd.xlane.f32.xlu0 %v796
        %v798 = vpop.xlane.xlu0 %797
        %v799 = vadd.f32 %v268, %v269
        %v800 = vadd.f32 %v799, %v270
        %v801 = vadd.f32 %v800, %v271
        %v802 = vadd.f32 %v801, %v272
        %v803 = vadd.f32 %v802, %v273
        %804 = vadd.xlane.f32.xlu0 %v803
        %v805 = vpop.xlane.xlu0 %804
        %v806 = vadd.f32 %v274, %v275
        %v807 = vadd.f32 %v806, %v276
        %v808 = vadd.f32 %v807, %v277
        %v809 = vadd.f32 %v808, %v278
        %v810 = vadd.f32 %v809, %v279
        %811 = vadd.xlane.f32.xlu0 %v810
        %v812 = vpop.xlane.xlu0 %811
        %v813 = vadd.f32 %v280, %v281
        %v814 = vadd.f32 %v813, %v282
        %v815 = vadd.f32 %v814, %v283
        %v816 = vadd.f32 %v815, %v284
        %v817 = vadd.f32 %v816, %v285
        %818 = vadd.xlane.f32.xlu0 %v817
        %v819 = vpop.xlane.xlu0 %818
        %v820 = vadd.f32 %v286, %v287
        %v821 = vadd.f32 %v820, %v288
        %v822 = vadd.f32 %v821, %v289
        %v823 = vadd.f32 %v822, %v290
        %v824 = vadd.f32 %v823, %v291
        %825 = vadd.xlane.f32.xlu0 %v824
        %v826 = vpop.xlane.xlu0 %825
        %v827 = vadd.f32 %v292, %v293
        %v828 = vadd.f32 %v827, %v294
        %v829 = vadd.f32 %v828, %v295
        %v830 = vadd.f32 %v829, %v296
        %v831 = vadd.f32 %v830, %v297
        %832 = vadd.xlane.f32.xlu0 %v831
        %v833 = vpop.xlane.xlu0 %832
        %v834 = vadd.f32 %v298, %v299
        %v835 = vadd.f32 %v834, %v300
        %v836 = vadd.f32 %v835, %v301
        %v837 = vadd.f32 %v836, %v302
        %v838 = vadd.f32 %v837, %v303
        %839 = vadd.xlane.f32.xlu0 %v838
        %v840 = vpop.xlane.xlu0 %839
        %v841 = vadd.f32 %v304, %v305
        %v842 = vadd.f32 %v841, %v306
        %v843 = vadd.f32 %v842, %v307
        %v844 = vadd.f32 %v843, %v308
        %v845 = vadd.f32 %v844, %v309
        %846 = vadd.xlane.f32.xlu0 %v845
        %v847 = vpop.xlane.xlu0 %846
        %v848 = vadd.f32 %v310, %v311
        %v849 = vadd.f32 %v848, %v312
        %v850 = vadd.f32 %v849, %v313
        %v851 = vadd.f32 %v850, %v314
        %v852 = vadd.f32 %v851, %v315
        %853 = vadd.xlane.f32.xlu0 %v852
        %v854 = vpop.xlane.xlu0 %853
        %v855 = vadd.f32 %v316, %v317
        %v856 = vadd.f32 %v855, %v318
        %v857 = vadd.f32 %v856, %v319
        %v858 = vadd.f32 %v857, %v320
        %v859 = vadd.f32 %v858, %v321
        %860 = vadd.xlane.f32.xlu0 %v859
        %v861 = vpop.xlane.xlu0 %860
        %v862 = vadd.f32 %v322, %v323
        %v863 = vadd.f32 %v862, %v324
        %v864 = vadd.f32 %v863, %v325
        %v865 = vadd.f32 %v864, %v326
        %v866 = vadd.f32 %v865, %v327
        %867 = vadd.xlane.f32.xlu0 %v866
        %v868 = vpop.xlane.xlu0 %867
        %v869 = vadd.f32 %v328, %v329
        %v870 = vadd.f32 %v869, %v330
        %v871 = vadd.f32 %v870, %v331
        %v872 = vadd.f32 %v871, %v332
        %v873 = vadd.f32 %v872, %v333
        %874 = vadd.xlane.f32.xlu0 %v873
        %v875 = vpop.xlane.xlu0 %874
        %v876 = vadd.f32 %v334, %v335
        %v877 = vadd.f32 %v876, %v336
        %v878 = vadd.f32 %v877, %v337
        %v879 = vadd.f32 %v878, %v338
        %v880 = vadd.f32 %v879, %v339
        %881 = vadd.xlane.f32.xlu0 %v880
        %v882 = vpop.xlane.xlu0 %881
        %v883 = vadd.f32 %v340, %v341
        %v884 = vadd.f32 %v883, %v342
        %v885 = vadd.f32 %v884, %v343
        %v886 = vadd.f32 %v885, %v344
        %v887 = vadd.f32 %v886, %v345
        %888 = vadd.xlane.f32.xlu0 %v887
        %v889 = vpop.xlane.xlu0 %888
        %v890 = vadd.f32 %v346, %v347
        %v891 = vadd.f32 %v890, %v348
        %v892 = vadd.f32 %v891, %v349
        %v893 = vadd.f32 %v892, %v350
        %v894 = vadd.f32 %v893, %v351
        %895 = vadd.xlane.f32.xlu0 %v894
        %v896 = vpop.xlane.xlu0 %895
        %v897 = vadd.f32 %v352, %v353
        %v898 = vadd.f32 %v897, %v354
        %v899 = vadd.f32 %v898, %v355
        %v900 = vadd.f32 %v899, %v356
        %v901 = vadd.f32 %v900, %v357
        %902 = vadd.xlane.f32.xlu0 %v901
        %v903 = vpop.xlane.xlu0 %902
        %v904 = vadd.f32 %v358, %v359
        %v905 = vadd.f32 %v904, %v360
        %v906 = vadd.f32 %v905, %v361
        %v907 = vadd.f32 %v906, %v362
        %v908 = vadd.f32 %v907, %v363
        %909 = vadd.xlane.f32.xlu0 %v908
        %v910 = vpop.xlane.xlu0 %909
        %v911 = vadd.f32 %v364, %v365
        %v912 = vadd.f32 %v911, %v366
        %v913 = vadd.f32 %v912, %v367
        %v914 = vadd.f32 %v913, %v368
        %v915 = vadd.f32 %v914, %v369
        %916 = vadd.xlane.f32.xlu0 %v915
        %v917 = vpop.xlane.xlu0 %916
        %v918 = vadd.f32 %v370, %v371
        %v919 = vadd.f32 %v918, %v372
        %v920 = vadd.f32 %v919, %v373
        %v921 = vadd.f32 %v920, %v374
        %v922 = vadd.f32 %v921, %v375
        %923 = vadd.xlane.f32.xlu0 %v922
        %v924 = vpop.xlane.xlu0 %923
        %v925 = vadd.f32 %v376, %v377
        %v926 = vadd.f32 %v925, %v378
        %v927 = vadd.f32 %v926, %v379
        %v928 = vadd.f32 %v927, %v380
        %v929 = vadd.f32 %v928, %v381
        %930 = vadd.xlane.f32.xlu0 %v929
        %v931 = vpop.xlane.xlu0 %930
        %v932 = vadd.f32 %v382, %v383
        %v933 = vadd.f32 %v932, %v384
        %v934 = vadd.f32 %v933, %v385
        %v935 = vadd.f32 %v934, %v386
        %v936 = vadd.f32 %v935, %v387
        %937 = vadd.xlane.f32.xlu0 %v936
        %v938 = vpop.xlane.xlu0 %937
        %v939 = vadd.f32 %v388, %v389
        %v940 = vadd.f32 %v939, %v390
        %v941 = vadd.f32 %v940, %v391
        %v942 = vadd.f32 %v941, %v392
        %v943 = vadd.f32 %v942, %v393
        %944 = vadd.xlane.f32.xlu0 %v943
        %v945 = vpop.xlane.xlu0 %944
        %v946 = vadd.f32 %v394, %v395
        %v947 = vadd.f32 %v946, %v396
        %v948 = vadd.f32 %v947, %v397
        %v949 = vadd.f32 %v948, %v398
        %v950 = vadd.f32 %v949, %v399
        %951 = vadd.xlane.f32.xlu0 %v950
        %v952 = vpop.xlane.xlu0 %951
        %v953 = vadd.f32 %v400, %v401
        %v954 = vadd.f32 %v953, %v402
        %v955 = vadd.f32 %v954, %v403
        %v956 = vadd.f32 %v955, %v404
        %v957 = vadd.f32 %v956, %v405
        %958 = vadd.xlane.f32.xlu0 %v957
        %v959 = vpop.xlane.xlu0 %958
        %v960 = vadd.f32 %v406, %v407
        %v961 = vadd.f32 %v960, %v408
        %v962 = vadd.f32 %v961, %v409
        %v963 = vadd.f32 %v962, %v410
        %v964 = vadd.f32 %v963, %v411
        %965 = vadd.xlane.f32.xlu0 %v964
        %v966 = vpop.xlane.xlu0 %965
        %v967 = vadd.f32 %v412, %v413
        %v968 = vadd.f32 %v967, %v414
        %v969 = vadd.f32 %v968, %v415
        %v970 = vadd.f32 %v969, %v416
        %v971 = vadd.f32 %v970, %v417
        %972 = vadd.xlane.f32.xlu0 %v971
        %v973 = vpop.xlane.xlu0 %972
        %v974 = vadd.f32 %v418, %v419
        %v975 = vadd.f32 %v974, %v420
        %v976 = vadd.f32 %v975, %v421
        %v977 = vadd.f32 %v976, %v422
        %v978 = vadd.f32 %v977, %v423
        %979 = vadd.xlane.f32.xlu0 %v978
        %v980 = vpop.xlane.xlu0 %979
        %v981 = vadd.f32 %v424, %v425
        %v982 = vadd.f32 %v981, %v426
        %v983 = vadd.f32 %v982, %v427
        %v984 = vadd.f32 %v983, %v428
        %v985 = vadd.f32 %v984, %v429
        %986 = vadd.xlane.f32.xlu0 %v985
        %v987 = vpop.xlane.xlu0 %986
        %v988 = vadd.f32 %v430, %v431
        %v989 = vadd.f32 %v988, %v432
        %v990 = vadd.f32 %v989, %v433
        %v991 = vadd.f32 %v990, %v434
        %v992 = vadd.f32 %v991, %v435
        %993 = vadd.xlane.f32.xlu0 %v992
        %v994 = vpop.xlane.xlu0 %993
        %v995 = vadd.f32 %v436, %v437
        %v996 = vadd.f32 %v995, %v438
        %v997 = vadd.f32 %v996, %v439
        %v998 = vadd.f32 %v997, %v440
        %v999 = vadd.f32 %v998, %v441
        %1000 = vadd.xlane.f32.xlu0 %v999
        %v1001 = vpop.xlane.xlu0 %1000
        %v1002 = vmul.f32 %v728, 0.0013020834
        %v1003 = vmul.f32 %v735, 0.0013020834
        %v1004 = vmul.f32 %v742, 0.0013020834
        %v1005 = vmul.f32 %v749, 0.0013020834
        %v1006 = vmul.f32 %v756, 0.0013020834
        %v1007 = vmul.f32 %v763, 0.0013020834
        %v1008 = vmul.f32 %v770, 0.0013020834
        %v1009 = vmul.f32 %v777, 0.0013020834
        %v1010 = vmul.f32 %v784, 0.0013020834
        %v1011 = vmul.f32 %v791, 0.0013020834
        %v1012 = vmul.f32 %v798, 0.0013020834
        %v1013 = vmul.f32 %v805, 0.0013020834
        %v1014 = vmul.f32 %v812, 0.0013020834
        %v1015 = vmul.f32 %v819, 0.0013020834
        %v1016 = vmul.f32 %v826, 0.0013020834
        %v1017 = vmul.f32 %v833, 0.0013020834
        %v1018 = vmul.f32 %v840, 0.0013020834
        %v1019 = vmul.f32 %v847, 0.0013020834
        %v1020 = vmul.f32 %v854, 0.0013020834
        %v1021 = vmul.f32 %v861, 0.0013020834
        %v1022 = vmul.f32 %v868, 0.0013020834
        %v1023 = vmul.f32 %v875, 0.0013020834
        %v1024 = vmul.f32 %v882, 0.0013020834
        %v1025 = vmul.f32 %v889, 0.0013020834
        %v1026 = vmul.f32 %v896, 0.0013020834
        %v1027 = vmul.f32 %v903, 0.0013020834
        %v1028 = vmul.f32 %v910, 0.0013020834
        %v1029 = vmul.f32 %v917, 0.0013020834
        %v1030 = vmul.f32 %v924, 0.0013020834
        %v1031 = vmul.f32 %v931, 0.0013020834
        %v1032 = vmul.f32 %v938, 0.0013020834
        %v1033 = vmul.f32 %v945, 0.0013020834
        %v1034 = vmul.f32 %v952, 0.0013020834
        %v1035 = vmul.f32 %v959, 0.0013020834
        %v1036 = vmul.f32 %v966, 0.0013020834
        %v1037 = vmul.f32 %v973, 0.0013020834
        %v1038 = vmul.f32 %v980, 0.0013020834
        %v1039 = vmul.f32 %v987, 0.0013020834
        %v1040 = vmul.f32 %v994, 0.0013020834
        %v1041 = vmul.f32 %v1001, 0.0013020834
        %v1082 = vlaneseq
        %v1083 = vand.u32 %v1082, 127
        %v1084 = vadd.s32 %v1083, 4294967293
        %v1085 = vlaneseq
        %v1086 = vshrl.u32 %v1085, 7
        %v1087 = vsub.s32 %v1084, %v1086
        %v1088 = vrot.slane %v448, %v1087
        %v1089 = vadd.s32 %v1083, 4294967285
        %v1090 = vlaneseq
        %v1091 = vshrl.u32 %v1090, 7
        %v1092 = vsub.s32 %v1089, %v1091
        %v1093 = vrot.slane %v455, %v1092
        %vm1094 = vcmask 154712
        %v1095 = vsel %vm1094, %v1093, %v1088
        %v1096 = vadd.s32 %v1083, 4294967277
        %v1097 = vlaneseq
        %v1098 = vshrl.u32 %v1097, 7
        %v1099 = vsub.s32 %v1096, %v1098
        %v1100 = vrot.slane %v462, %v1099
        %vm1101 = vcmask 220312
        %v1102 = vsel %vm1101, %v1100, %v1095
        %v1103 = vadd.s32 %v1083, 4294967269
        %v1104 = vlaneseq
        %v1105 = vshrl.u32 %v1104, 7
        %v1106 = vsub.s32 %v1103, %v1105
        %v1107 = vrot.slane %v469, %v1106
        %vm1108 = vcmask 285912
        %v1109 = vsel %vm1108, %v1107, %v1102
        %v1110 = vadd.s32 %v1083, 4294967261
        %v1111 = vlaneseq
        %v1112 = vshrl.u32 %v1111, 7
        %v1113 = vsub.s32 %v1110, %v1112
        %v1114 = vrot.slane %v476, %v1113
        %vm1115 = vcmask 351512
        %v1116 = vsel %vm1115, %v1114, %v1109
        %v1117 = vadd.s32 %v1083, 4294967253
        %v1118 = vlaneseq
        %v1119 = vshrl.u32 %v1118, 7
        %v1120 = vsub.s32 %v1117, %v1119
        %v1121 = vrot.slane %v483, %v1120
        %vm1122 = vcmask 417112
        %v1123 = vsel %vm1122, %v1121, %v1116
        %v1124 = vadd.s32 %v1083, 4294967245
        %v1125 = vlaneseq
        %v1126 = vshrl.u32 %v1125, 7
        %v1127 = vsub.s32 %v1124, %v1126
        %v1128 = vrot.slane %v490, %v1127
        %vm1129 = vcmask 482712
        %v1130 = vsel %vm1129, %v1128, %v1123
        %v1131 = vadd.s32 %v1083, 4294967237
        %v1132 = vlaneseq
        %v1133 = vshrl.u32 %v1132, 7
        %v1134 = vsub.s32 %v1131, %v1133
        %v1135 = vrot.slane %v497, %v1134
        %vm1136 = vcmask 548312
        %v1137 = vsel %vm1136, %v1135, %v1130
        %v1138 = vadd.s32 %v1083, 4294967229
        %v1139 = vlaneseq
        %v1140 = vshrl.u32 %v1139, 7
        %v1141 = vsub.s32 %v1138, %v1140
        %v1142 = vrot.slane %v504, %v1141
        %vm1143 = vcmask 613912
        %v1144 = vsel %vm1143, %v1142, %v1137
        %v1145 = vadd.s32 %v1083, 4294967221
        %v1146 = vlaneseq
        %v1147 = vshrl.u32 %v1146, 7
        %v1148 = vsub.s32 %v1145, %v1147
        %v1149 = vrot.slane %v511, %v1148
        %vm1150 = vcmask 679512
        %v1151 = vsel %vm1150, %v1149, %v1144
        %v1152 = vadd.s32 %v1083, 4294967213
        %v1153 = vlaneseq
        %v1154 = vshrl.u32 %v1153, 7
        %v1155 = vsub.s32 %v1152, %v1154
        %v1156 = vrot.slane %v518, %v1155
        %vm1157 = vcmask 745112
        %v1158 = vsel %vm1157, %v1156, %v1151
        %v1159 = vadd.s32 %v1083, 4294967205
        %v1160 = vlaneseq
        %v1161 = vshrl.u32 %v1160, 7
        %v1162 = vsub.s32 %v1159, %v1161
        %v1163 = vrot.slane %v525, %v1162
        %vm1164 = vcmask 810712
        %v1165 = vsel %vm1164, %v1163, %v1158
        %v1166 = vadd.s32 %v1083, 4294967197
        %v1167 = vlaneseq
        %v1168 = vshrl.u32 %v1167, 7
        %v1169 = vsub.s32 %v1166, %v1168
        %v1170 = vrot.slane %v532, %v1169
        %vm1171 = vcmask 876312
        %v1172 = vsel %vm1171, %v1170, %v1165
        %v1173 = vadd.s32 %v1083, 4294967189
        %v1174 = vlaneseq
        %v1175 = vshrl.u32 %v1174, 7
        %v1176 = vsub.s32 %v1173, %v1175
        %v1177 = vrot.slane %v539, %v1176
        %vm1178 = vcmask 941912
        %v1179 = vsel %vm1178, %v1177, %v1172
        %v1180 = vadd.s32 %v1083, 4294967181
        %v1181 = vlaneseq
        %v1182 = vshrl.u32 %v1181, 7
        %v1183 = vsub.s32 %v1180, %v1182
        %v1184 = vrot.slane %v546, %v1183
        %vm1185 = vcmask 1007512
        %v1186 = vsel %vm1185, %v1184, %v1179
        %v1187 = vadd.s32 %v1083, 4294967173
        %v1188 = vlaneseq
        %v1189 = vshrl.u32 %v1188, 7
        %v1190 = vsub.s32 %v1187, %v1189
        %v1191 = vrot.slane %v553, %v1190
        %vm1192 = vcmask 1048536
        %v1193 = vsel %vm1192, %v1191, %v1186
        %v1194 = vadd.s32 %v1083, 5
        %v1195 = vlaneseq
        %v1196 = vshrl.u32 %v1195, 7
        %v1197 = vsub.s32 %v1194, %v1196
        %v1198 = vrot.slane %v553, %v1197
        %v1199 = vlaneseq
        %v1200 = vshrl.u32 %v1199, 7
        %v1201 = vsub.s32 %v1084, %v1200
        %v1202 = vrot.slane %v560, %v1201
        %vm1203 = vcmask 89112
        %v1204 = vsel %vm1203, %v1202, %v1198
        %v1205 = vlaneseq
        %v1206 = vshrl.u32 %v1205, 7
        %v1207 = vsub.s32 %v1089, %v1206
        %v1208 = vrot.slane %v567, %v1207
        %v1209 = vsel %vm1094, %v1208, %v1204
        %v1210 = vlaneseq
        %v1211 = vshrl.u32 %v1210, 7
        %v1212 = vsub.s32 %v1096, %v1211
        %v1213 = vrot.slane %v574, %v1212
        %v1214 = vsel %vm1101, %v1213, %v1209
        %v1215 = vlaneseq
        %v1216 = vshrl.u32 %v1215, 7
        %v1217 = vsub.s32 %v1103, %v1216
        %v1218 = vrot.slane %v581, %v1217
        %v1219 = vsel %vm1108, %v1218, %v1214
        %v1220 = vlaneseq
        %v1221 = vshrl.u32 %v1220, 7
        %v1222 = vsub.s32 %v1110, %v1221
        %v1223 = vrot.slane %v588, %v1222
        %v1224 = vsel %vm1115, %v1223, %v1219
        %v1225 = vlaneseq
        %v1226 = vshrl.u32 %v1225, 7
        %v1227 = vsub.s32 %v1117, %v1226
        %v1228 = vrot.slane %v595, %v1227
        %v1229 = vsel %vm1122, %v1228, %v1224
        %v1230 = vlaneseq
        %v1231 = vshrl.u32 %v1230, 7
        %v1232 = vsub.s32 %v1124, %v1231
        %v1233 = vrot.slane %v602, %v1232
        %v1234 = vsel %vm1129, %v1233, %v1229
        %v1235 = vlaneseq
        %v1236 = vshrl.u32 %v1235, 7
        %v1237 = vsub.s32 %v1131, %v1236
        %v1238 = vrot.slane %v609, %v1237
        %v1239 = vsel %vm1136, %v1238, %v1234
        %v1240 = vlaneseq
        %v1241 = vshrl.u32 %v1240, 7
        %v1242 = vsub.s32 %v1138, %v1241
        %v1243 = vrot.slane %v616, %v1242
        %v1244 = vsel %vm1143, %v1243, %v1239
        %v1245 = vlaneseq
        %v1246 = vshrl.u32 %v1245, 7
        %v1247 = vsub.s32 %v1145, %v1246
        %v1248 = vrot.slane %v623, %v1247
        %v1249 = vsel %vm1150, %v1248, %v1244
        %v1250 = vlaneseq
        %v1251 = vshrl.u32 %v1250, 7
        %v1252 = vsub.s32 %v1152, %v1251
        %v1253 = vrot.slane %v630, %v1252
        %v1254 = vsel %vm1157, %v1253, %v1249
        %v1255 = vlaneseq
        %v1256 = vshrl.u32 %v1255, 7
        %v1257 = vsub.s32 %v1159, %v1256
        %v1258 = vrot.slane %v637, %v1257
        %v1259 = vsel %vm1164, %v1258, %v1254
        %v1260 = vlaneseq
        %v1261 = vshrl.u32 %v1260, 7
        %v1262 = vsub.s32 %v1166, %v1261
        %v1263 = vrot.slane %v644, %v1262
        %v1264 = vsel %vm1171, %v1263, %v1259
        %v1265 = vlaneseq
        %v1266 = vshrl.u32 %v1265, 7
        %v1267 = vsub.s32 %v1173, %v1266
        %v1268 = vrot.slane %v651, %v1267
        %v1269 = vsel %vm1178, %v1268, %v1264
        %v1270 = vlaneseq
        %v1271 = vshrl.u32 %v1270, 7
        %v1272 = vsub.s32 %v1180, %v1271
        %v1273 = vrot.slane %v658, %v1272
        %v1274 = vsel %vm1185, %v1273, %v1269
        %v1275 = vlaneseq
        %v1276 = vshrl.u32 %v1275, 7
        %v1277 = vsub.s32 %v1187, %v1276
        %v1278 = vrot.slane %v665, %v1277
        %v1279 = vsel %vm1192, %v1278, %v1274
        %v1280 = vlaneseq
        %v1281 = vshrl.u32 %v1280, 7
        %v1282 = vsub.s32 %v1194, %v1281
        %v1283 = vrot.slane %v665, %v1282
        %v1284 = vlaneseq
        %v1285 = vshrl.u32 %v1284, 7
        %v1286 = vsub.s32 %v1084, %v1285
        %v1287 = vrot.slane %v672, %v1286
        %v1288 = vsel %vm1203, %v1287, %v1283
        %v1289 = vlaneseq
        %v1290 = vshrl.u32 %v1289, 7
        %v1291 = vsub.s32 %v1089, %v1290
        %v1292 = vrot.slane %v679, %v1291
        %v1293 = vsel %vm1094, %v1292, %v1288
        %v1294 = vlaneseq
        %v1295 = vshrl.u32 %v1294, 7
        %v1296 = vsub.s32 %v1096, %v1295
        %v1297 = vrot.slane %v686, %v1296
        %v1298 = vsel %vm1101, %v1297, %v1293
        %v1299 = vlaneseq
        %v1300 = vshrl.u32 %v1299, 7
        %v1301 = vsub.s32 %v1103, %v1300
        %v1302 = vrot.slane %v693, %v1301
        %v1303 = vsel %vm1108, %v1302, %v1298
        %v1304 = vlaneseq
        %v1305 = vshrl.u32 %v1304, 7
        %v1306 = vsub.s32 %v1110, %v1305
        %v1307 = vrot.slane %v700, %v1306
        %v1308 = vsel %vm1115, %v1307, %v1303
        %v1309 = vlaneseq
        %v1310 = vshrl.u32 %v1309, 7
        %v1311 = vsub.s32 %v1117, %v1310
        %v1312 = vrot.slane %v707, %v1311
        %v1313 = vsel %vm1122, %v1312, %v1308
        %v1314 = vlaneseq
        %v1315 = vshrl.u32 %v1314, 7
        %v1316 = vsub.s32 %v1124, %v1315
        %v1317 = vrot.slane %v714, %v1316
        %v1318 = vsel %vm1129, %v1317, %v1313
        %v1319 = vlaneseq
        %v1320 = vshrl.u32 %v1319, 7
        %v1321 = vsub.s32 %v1131, %v1320
        %v1322 = vrot.slane %v721, %v1321
        %v1323 = vsel %vm1136, %v1322, %v1318
        %vm1327 = vcmask 23552
        %v1328 = vsel %vm1327, 0.0, %v1193
        %vm1329 = vcmask 547840
        %v1330 = vsel %vm1329, %v1323, 0.0
        %v1371 = vlaneseq
        %v1372 = vshrl.u32 %v1371, 7
        %v1373 = vsub.s32 %v1084, %v1372
        %v1374 = vrot.slane %v1002, %v1373
        %v1375 = vlaneseq
        %v1376 = vshrl.u32 %v1375, 7
        %v1377 = vsub.s32 %v1089, %v1376
        %v1378 = vrot.slane %v1003, %v1377
        %v1379 = vsel %vm1094, %v1378, %v1374
        %v1380 = vlaneseq
        %v1381 = vshrl.u32 %v1380, 7
        %v1382 = vsub.s32 %v1096, %v1381
        %v1383 = vrot.slane %v1004, %v1382
        %v1384 = vsel %vm1101, %v1383, %v1379
        %v1385 = vlaneseq
        %v1386 = vshrl.u32 %v1385, 7
        %v1387 = vsub.s32 %v1103, %v1386
        %v1388 = vrot.slane %v1005, %v1387
        %v1389 = vsel %vm1108, %v1388, %v1384
        %v1390 = vlaneseq
        %v1391 = vshrl.u32 %v1390, 7
        %v1392 = vsub.s32 %v1110, %v1391
        %v1393 = vrot.slane %v1006, %v1392
        %v1394 = vsel %vm1115, %v1393, %v1389
        %v1395 = vlaneseq
        %v1396 = vshrl.u32 %v1395, 7
        %v1397 = vsub.s32 %v1117, %v1396
        %v1398 = vrot.slane %v1007, %v1397
        %v1399 = vsel %vm1122, %v1398, %v1394
        %v1400 = vlaneseq
        %v1401 = vshrl.u32 %v1400, 7
        %v1402 = vsub.s32 %v1124, %v1401
        %v1403 = vrot.slane %v1008, %v1402
        %v1404 = vsel %vm1129, %v1403, %v1399
        %v1405 = vlaneseq
        %v1406 = vshrl.u32 %v1405, 7
        %v1407 = vsub.s32 %v1131, %v1406
        %v1408 = vrot.slane %v1009, %v1407
        %v1409 = vsel %vm1136, %v1408, %v1404
        %v1410 = vlaneseq
        %v1411 = vshrl.u32 %v1410, 7
        %v1412 = vsub.s32 %v1138, %v1411
        %v1413 = vrot.slane %v1010, %v1412
        %v1414 = vsel %vm1143, %v1413, %v1409
        %v1415 = vlaneseq
        %v1416 = vshrl.u32 %v1415, 7
        %v1417 = vsub.s32 %v1145, %v1416
        %v1418 = vrot.slane %v1011, %v1417
        %v1419 = vsel %vm1150, %v1418, %v1414
        %v1420 = vlaneseq
        %v1421 = vshrl.u32 %v1420, 7
        %v1422 = vsub.s32 %v1152, %v1421
        %v1423 = vrot.slane %v1012, %v1422
        %v1424 = vsel %vm1157, %v1423, %v1419
        %v1425 = vlaneseq
        %v1426 = vshrl.u32 %v1425, 7
        %v1427 = vsub.s32 %v1159, %v1426
        %v1428 = vrot.slane %v1013, %v1427
        %v1429 = vsel %vm1164, %v1428, %v1424
        %v1430 = vlaneseq
        %v1431 = vshrl.u32 %v1430, 7
        %v1432 = vsub.s32 %v1166, %v1431
        %v1433 = vrot.slane %v1014, %v1432
        %v1434 = vsel %vm1171, %v1433, %v1429
        %v1435 = vlaneseq
        %v1436 = vshrl.u32 %v1435, 7
        %v1437 = vsub.s32 %v1173, %v1436
        %v1438 = vrot.slane %v1015, %v1437
        %v1439 = vsel %vm1178, %v1438, %v1434
        %v1440 = vlaneseq
        %v1441 = vshrl.u32 %v1440, 7
        %v1442 = vsub.s32 %v1180, %v1441
        %v1443 = vrot.slane %v1016, %v1442
        %v1444 = vsel %vm1185, %v1443, %v1439
        %v1445 = vlaneseq
        %v1446 = vshrl.u32 %v1445, 7
        %v1447 = vsub.s32 %v1187, %v1446
        %v1448 = vrot.slane %v1017, %v1447
        %v1449 = vsel %vm1192, %v1448, %v1444
        %v1450 = vlaneseq
        %v1451 = vshrl.u32 %v1450, 7
        %v1452 = vsub.s32 %v1194, %v1451
        %v1453 = vrot.slane %v1017, %v1452
        %v1454 = vlaneseq
        %v1455 = vshrl.u32 %v1454, 7
        %v1456 = vsub.s32 %v1084, %v1455
        %v1457 = vrot.slane %v1018, %v1456
        %v1458 = vsel %vm1203, %v1457, %v1453
        %v1459 = vlaneseq
        %v1460 = vshrl.u32 %v1459, 7
        %v1461 = vsub.s32 %v1089, %v1460
        %v1462 = vrot.slane %v1019, %v1461
        %v1463 = vsel %vm1094, %v1462, %v1458
        %v1464 = vlaneseq
        %v1465 = vshrl.u32 %v1464, 7
        %v1466 = vsub.s32 %v1096, %v1465
        %v1467 = vrot.slane %v1020, %v1466
        %v1468 = vsel %vm1101, %v1467, %v1463
        %v1469 = vlaneseq
        %v1470 = vshrl.u32 %v1469, 7
        %v1471 = vsub.s32 %v1103, %v1470
        %v1472 = vrot.slane %v1021, %v1471
        %v1473 = vsel %vm1108, %v1472, %v1468
        %v1474 = vlaneseq
        %v1475 = vshrl.u32 %v1474, 7
        %v1476 = vsub.s32 %v1110, %v1475
        %v1477 = vrot.slane %v1022, %v1476
        %v1478 = vsel %vm1115, %v1477, %v1473
        %v1479 = vlaneseq
        %v1480 = vshrl.u32 %v1479, 7
        %v1481 = vsub.s32 %v1117, %v1480
        %v1482 = vrot.slane %v1023, %v1481
        %v1483 = vsel %vm1122, %v1482, %v1478
        %v1484 = vlaneseq
        %v1485 = vshrl.u32 %v1484, 7
        %v1486 = vsub.s32 %v1124, %v1485
        %v1487 = vrot.slane %v1024, %v1486
        %v1488 = vsel %vm1129, %v1487, %v1483
        %v1489 = vlaneseq
        %v1490 = vshrl.u32 %v1489, 7
        %v1491 = vsub.s32 %v1131, %v1490
        %v1492 = vrot.slane %v1025, %v1491
        %v1493 = vsel %vm1136, %v1492, %v1488
        %v1494 = vlaneseq
        %v1495 = vshrl.u32 %v1494, 7
        %v1496 = vsub.s32 %v1138, %v1495
        %v1497 = vrot.slane %v1026, %v1496
        %v1498 = vsel %vm1143, %v1497, %v1493
        %v1499 = vlaneseq
        %v1500 = vshrl.u32 %v1499, 7
        %v1501 = vsub.s32 %v1145, %v1500
        %v1502 = vrot.slane %v1027, %v1501
        %v1503 = vsel %vm1150, %v1502, %v1498
        %v1504 = vlaneseq
        %v1505 = vshrl.u32 %v1504, 7
        %v1506 = vsub.s32 %v1152, %v1505
        %v1507 = vrot.slane %v1028, %v1506
        %v1508 = vsel %vm1157, %v1507, %v1503
        %v1509 = vlaneseq
        %v1510 = vshrl.u32 %v1509, 7
        %v1511 = vsub.s32 %v1159, %v1510
        %v1512 = vrot.slane %v1029, %v1511
        %v1513 = vsel %vm1164, %v1512, %v1508
        %v1514 = vlaneseq
        %v1515 = vshrl.u32 %v1514, 7
        %v1516 = vsub.s32 %v1166, %v1515
        %v1517 = vrot.slane %v1030, %v1516
        %v1518 = vsel %vm1171, %v1517, %v1513
        %v1519 = vlaneseq
        %v1520 = vshrl.u32 %v1519, 7
        %v1521 = vsub.s32 %v1173, %v1520
        %v1522 = vrot.slane %v1031, %v1521
        %v1523 = vsel %vm1178, %v1522, %v1518
        %v1524 = vlaneseq
        %v1525 = vshrl.u32 %v1524, 7
        %v1526 = vsub.s32 %v1180, %v1525
        %v1527 = vrot.slane %v1032, %v1526
        %v1528 = vsel %vm1185, %v1527, %v1523
        %v1529 = vlaneseq
        %v1530 = vshrl.u32 %v1529, 7
        %v1531 = vsub.s32 %v1187, %v1530
        %v1532 = vrot.slane %v1033, %v1531
        %v1533 = vsel %vm1192, %v1532, %v1528
        %v1534 = vlaneseq
        %v1535 = vshrl.u32 %v1534, 7
        %v1536 = vsub.s32 %v1194, %v1535
        %v1537 = vrot.slane %v1033, %v1536
        %v1538 = vlaneseq
        %v1539 = vshrl.u32 %v1538, 7
        %v1540 = vsub.s32 %v1084, %v1539
        %v1541 = vrot.slane %v1034, %v1540
        %v1542 = vsel %vm1203, %v1541, %v1537
        %v1543 = vlaneseq
        %v1544 = vshrl.u32 %v1543, 7
        %v1545 = vsub.s32 %v1089, %v1544
        %v1546 = vrot.slane %v1035, %v1545
        %v1547 = vsel %vm1094, %v1546, %v1542
        %v1548 = vlaneseq
        %v1549 = vshrl.u32 %v1548, 7
        %v1550 = vsub.s32 %v1096, %v1549
        %v1551 = vrot.slane %v1036, %v1550
        %v1552 = vsel %vm1101, %v1551, %v1547
        %v1553 = vlaneseq
        %v1554 = vshrl.u32 %v1553, 7
        %v1555 = vsub.s32 %v1103, %v1554
        %v1556 = vrot.slane %v1037, %v1555
        %v1557 = vsel %vm1108, %v1556, %v1552
        %v1558 = vlaneseq
        %v1559 = vshrl.u32 %v1558, 7
        %v1560 = vsub.s32 %v1110, %v1559
        %v1561 = vrot.slane %v1038, %v1560
        %v1562 = vsel %vm1115, %v1561, %v1557
        %v1563 = vlaneseq
        %v1564 = vshrl.u32 %v1563, 7
        %v1565 = vsub.s32 %v1117, %v1564
        %v1566 = vrot.slane %v1039, %v1565
        %v1567 = vsel %vm1122, %v1566, %v1562
        %v1568 = vlaneseq
        %v1569 = vshrl.u32 %v1568, 7
        %v1570 = vsub.s32 %v1124, %v1569
        %v1571 = vrot.slane %v1040, %v1570
        %v1572 = vsel %vm1129, %v1571, %v1567
        %v1573 = vlaneseq
        %v1574 = vshrl.u32 %v1573, 7
        %v1575 = vsub.s32 %v1131, %v1574
        %v1576 = vrot.slane %v1041, %v1575
        %v1577 = vsel %vm1136, %v1576, %v1572
        %v1581 = vsel %vm1327, 0.0, %v1449
        %v1582 = vsel %vm1329, %v1577, 0.0
        %s1583 = sld [smem:[#allocation2]]
        %v1584 = vstv %s1583
        %s1585 = sld [smem:[#allocation3]]
        %v1586 = vstv %s1585
        %v1587 = vmul.f32 %v1586, %v1328
        %v1588 = vmul.f32 %v1586, %v1279
        %v1589 = vmul.f32 %v1586, %v1330
        %s1590 = sld [smem:[#allocation3 + $0x7]]
        %v1591 = vstv %s1590
        %v1592 = vmul.f32 %v1591, %v1581
        %v1593 = vmul.f32 %v1591, %v1533
        %v1594 = vmul.f32 %v1591, %v1582
        %v1595 = vadd.f32 %v1587, %v1592
        %v1596 = vadd.f32 %v1588, %v1593
        %v1597 = vadd.f32 %v1589, %v1594
        %v1598 = vadd.f32 %v1584, %v1595
        %v1599 = vadd.f32 %v1584, %v1596
        %v1600 = vadd.f32 %v1584, %v1597
        %s1601 = sld [smem:[#allocation3 + $0x1]]
        %v1602 = vstv %s1601
        %v1603 = vmul.f32 %v1602, %v1328
        %v1604 = vmul.f32 %v1602, %v1279
        %v1605 = vmul.f32 %v1602, %v1330
        %s1606 = sld [smem:[#allocation3 + $0x8]]
        %v1607 = vstv %s1606
        %v1608 = vmul.f32 %v1607, %v1581
        %v1609 = vmul.f32 %v1607, %v1533
        %v1610 = vmul.f32 %v1607, %v1582
        %v1611 = vadd.f32 %v1603, %v1608
        %v1612 = vadd.f32 %v1604, %v1609
        %v1613 = vadd.f32 %v1605, %v1610
        %1617 = vrot.lane.b32.xlu0 %v1611, 127
        %v1618 = vpop.permute.xlu0 %1617
        %1619 = vrot.lane.b32.xlu0 %v1612, 127
        %v1620 = vpop.permute.xlu0 %1619
        %1621 = vrot.lane.b32.xlu0 %v1613, 127
        %v1622 = vpop.permute.xlu0 %1621
        %vm1623 = vcmask 1039360
        %v1624 = vsel %vm1623, %v1618, %v1620
        %v1625 = vsel %vm1623, %v1620, %v1622
        %v1629 = vadd.f32 %v1598, %v1624
        %v1630 = vadd.f32 %v1599, %v1625
        %v1631 = vadd.f32 %v1600, %v1622
        %s1632 = sld [smem:[#allocation3 + $0x2]]
        %v1633 = vstv %s1632
        %v1634 = vmul.f32 %v1633, %v1328
        %v1635 = vmul.f32 %v1633, %v1279
        %v1636 = vmul.f32 %v1633, %v1330
        %s1637 = sld [smem:[#allocation3 + $0x9]]
        %v1638 = vstv %s1637
        %v1639 = vmul.f32 %v1638, %v1581
        %v1640 = vmul.f32 %v1638, %v1533
        %v1641 = vmul.f32 %v1638, %v1582
        %v1642 = vadd.f32 %v1634, %v1639
        %v1643 = vadd.f32 %v1635, %v1640
        %v1644 = vadd.f32 %v1636, %v1641
        %1648 = vrot.lane.b32.xlu0 %v1642, 126
        %v1649 = vpop.permute.xlu0 %1648
        %1650 = vrot.lane.b32.xlu0 %v1643, 126
        %v1651 = vpop.permute.xlu0 %1650
        %1652 = vrot.lane.b32.xlu0 %v1644, 126
        %v1653 = vpop.permute.xlu0 %1652
        %vm1654 = vcmask 1031168
        %v1655 = vsel %vm1654, %v1649, %v1651
        %v1656 = vsel %vm1654, %v1651, %v1653
        %v1660 = vadd.f32 %v1629, %v1655
        %v1661 = vadd.f32 %v1630, %v1656
        %v1662 = vadd.f32 %v1631, %v1653
        %s1663 = sld [smem:[#allocation3 + $0x3]]
        %v1664 = vstv %s1663
        %v1665 = vmul.f32 %v1664, %v1328
        %v1666 = vmul.f32 %v1664, %v1279
        %v1667 = vmul.f32 %v1664, %v1330
        %s1668 = sld [smem:[#allocation3 + $0xa]]
        %v1669 = vstv %s1668
        %v1670 = vmul.f32 %v1669, %v1581
        %v1671 = vmul.f32 %v1669, %v1533
        %v1672 = vmul.f32 %v1669, %v1582
        %v1673 = vadd.f32 %v1665, %v1670
        %v1674 = vadd.f32 %v1666, %v1671
        %v1675 = vadd.f32 %v1667, %v1672
        %1679 = vrot.lane.b32.xlu0 %v1673, 125
        %v1680 = vpop.permute.xlu0 %1679
        %1681 = vrot.lane.b32.xlu0 %v1674, 125
        %v1682 = vpop.permute.xlu0 %1681
        %1683 = vrot.lane.b32.xlu0 %v1675, 125
        %v1684 = vpop.permute.xlu0 %1683
        %vm1685 = vcmask 1022976
        %v1686 = vsel %vm1685, %v1680, %v1682
        %v1687 = vsel %vm1685, %v1682, %v1684
        %v1691 = vadd.f32 %v1660, %v1686
        %v1692 = vadd.f32 %v1661, %v1687
        %v1693 = vadd.f32 %v1662, %v1684
        %s1694 = sld [smem:[#allocation3 + $0x4]]
        %v1695 = vstv %s1694
        %v1696 = vmul.f32 %v1695, %v1328
        %v1697 = vmul.f32 %v1695, %v1279
        %v1698 = vmul.f32 %v1695, %v1330
        %s1699 = sld [smem:[#allocation3 + $0xb]]
        %v1700 = vstv %s1699
        %v1701 = vmul.f32 %v1700, %v1581
        %v1702 = vmul.f32 %v1700, %v1533
        %v1703 = vmul.f32 %v1700, %v1582
        %v1704 = vadd.f32 %v1696, %v1701
        %v1705 = vadd.f32 %v1697, %v1702
        %v1706 = vadd.f32 %v1698, %v1703
        %1710 = vrot.lane.b32.xlu0 %v1704, 124
        %v1711 = vpop.permute.xlu0 %1710
        %1712 = vrot.lane.b32.xlu0 %v1705, 124
        %v1713 = vpop.permute.xlu0 %1712
        %1714 = vrot.lane.b32.xlu0 %v1706, 124
        %v1715 = vpop.permute.xlu0 %1714
        %vm1716 = vcmask 1014784
        %v1717 = vsel %vm1716, %v1711, %v1713
        %v1718 = vsel %vm1716, %v1713, %v1715
        %v1722 = vadd.f32 %v1691, %v1717
        %v1723 = vadd.f32 %v1692, %v1718
        %v1724 = vadd.f32 %v1693, %v1715
        %s1725 = sld [smem:[#allocation3 + $0x5]]
        %v1726 = vstv %s1725
        %v1727 = vmul.f32 %v1726, %v1328
        %v1728 = vmul.f32 %v1726, %v1279
        %v1729 = vmul.f32 %v1726, %v1330
        %s1730 = sld [smem:[#allocation3 + $0xc]]
        %v1731 = vstv %s1730
        %v1732 = vmul.f32 %v1731, %v1581
        %v1733 = vmul.f32 %v1731, %v1533
        %v1734 = vmul.f32 %v1731, %v1582
        %v1735 = vadd.f32 %v1727, %v1732
        %v1736 = vadd.f32 %v1728, %v1733
        %v1737 = vadd.f32 %v1729, %v1734
        %1741 = vrot.lane.b32.xlu0 %v1735, 123
        %v1742 = vpop.permute.xlu0 %1741
        %1743 = vrot.lane.b32.xlu0 %v1736, 123
        %v1744 = vpop.permute.xlu0 %1743
        %1745 = vrot.lane.b32.xlu0 %v1737, 123
        %v1746 = vpop.permute.xlu0 %1745
        %vm1747 = vcmask 1006592
        %v1748 = vsel %vm1747, %v1742, %v1744
        %v1749 = vsel %vm1747, %v1744, %v1746
        %v1753 = vadd.f32 %v1722, %v1748
        %v1754 = vadd.f32 %v1723, %v1749
        %v1755 = vadd.f32 %v1724, %v1746
        %s1756 = sld [smem:[#allocation3 + $0x6]]
        %v1757 = vstv %s1756
        %v1758 = vmul.f32 %v1757, %v1328
        %v1759 = vmul.f32 %v1757, %v1279
        %v1760 = vmul.f32 %v1757, %v1330
        %s1761 = sld [smem:[#allocation3 + $0xd]]
        %v1762 = vstv %s1761
        %v1763 = vmul.f32 %v1762, %v1581
        %v1764 = vmul.f32 %v1762, %v1533
        %v1765 = vmul.f32 %v1762, %v1582
        %v1766 = vadd.f32 %v1758, %v1763
        %v1767 = vadd.f32 %v1759, %v1764
        %v1768 = vadd.f32 %v1760, %v1765
        %1772 = vrot.lane.b32.xlu0 %v1766, 122
        %v1773 = vpop.permute.xlu0 %1772
        %1774 = vrot.lane.b32.xlu0 %v1767, 122
        %v1775 = vpop.permute.xlu0 %1774
        %1776 = vrot.lane.b32.xlu0 %v1768, 122
        %v1777 = vpop.permute.xlu0 %1776
        %vm1778 = vcmask 998400
        %v1779 = vsel %vm1778, %v1773, %v1775
        %v1780 = vsel %vm1778, %v1775, %v1777
        %v1784 = vadd.f32 %v1753, %v1779
        %v1785 = vadd.f32 %v1754, %v1780
        %v1786 = vadd.f32 %v1755, %v1777
        %v1787 = vxor.u32 %v1784, 2147483648
        %v1788 = vxor.u32 %v1785, 2147483648
        %v1789 = vxor.u32 %v1786, 2147483648
        %v1790 = vmul.f32 %v1787, 1.442695
        %v1791 = vpow.pop %v1790
        %v1792 = vmul.f32 %v1788, 1.442695
        %v1793 = vpow.pop %v1792
        %v1794 = vmul.f32 %v1789, 1.442695
        %v1795 = vpow.pop %v1794
        %v1796 = vadd.f32 %v1791, 1.0
        %v1797 = vadd.f32 %v1793, 1.0
        %v1798 = vadd.f32 %v1795, 1.0
        %v1799 = vrcp.pop %v1796
        %v1800 = vmul.f32 1.0, %v1799
        %v1801 = vrcp.pop %v1797
        %v1802 = vmul.f32 1.0, %v1801
        %v1803 = vrcp.pop %v1798
        %v1804 = vmul.f32 1.0, %v1803
        %v1805 = vlaneseq
        %v1806 = vshrl.u32 %v1805, 7
        %v1807 = vsub.s32 0, %v1806
        %v1808 = vrot.slane %v1800, %v1807
        %1810 = vbcast.lane.b32.xlu0 %v1808, 256
        %v1811 = vpop.permute.xlu0 %1810
        %s1813 = sor.u32 256, 8
        %1814 = vbcast.lane.b32.xlu0 %v1808, %s1813
        %v1815 = vpop.permute.xlu0 %1814
        %s1817 = sor.u32 256, 16
        %1818 = vbcast.lane.b32.xlu0 %v1808, %s1817
        %v1819 = vpop.permute.xlu0 %1818
        %s1821 = sor.u32 256, 24
        %1822 = vbcast.lane.b32.xlu0 %v1808, %s1821
        %v1823 = vpop.permute.xlu0 %1822
        %s1825 = sor.u32 256, 32
        %1826 = vbcast.lane.b32.xlu0 %v1808, %s1825
        %v1827 = vpop.permute.xlu0 %1826
        %s1829 = sor.u32 256, 40
        %1830 = vbcast.lane.b32.xlu0 %v1808, %s1829
        %v1831 = vpop.permute.xlu0 %1830
        %s1833 = sor.u32 256, 48
        %1834 = vbcast.lane.b32.xlu0 %v1808, %s1833
        %v1835 = vpop.permute.xlu0 %1834
        %s1837 = sor.u32 256, 56
        %1838 = vbcast.lane.b32.xlu0 %v1808, %s1837
        %v1839 = vpop.permute.xlu0 %1838
        %s1841 = sor.u32 256, 64
        %1842 = vbcast.lane.b32.xlu0 %v1808, %s1841
        %v1843 = vpop.permute.xlu0 %1842
        %s1845 = sor.u32 256, 72
        %1846 = vbcast.lane.b32.xlu0 %v1808, %s1845
        %v1847 = vpop.permute.xlu0 %1846
        %s1849 = sor.u32 256, 80
        %1850 = vbcast.lane.b32.xlu0 %v1808, %s1849
        %v1851 = vpop.permute.xlu0 %1850
        %s1853 = sor.u32 256, 88
        %1854 = vbcast.lane.b32.xlu0 %v1808, %s1853
        %v1855 = vpop.permute.xlu0 %1854
        %s1857 = sor.u32 256, 96
        %1858 = vbcast.lane.b32.xlu0 %v1808, %s1857
        %v1859 = vpop.permute.xlu0 %1858
        %s1861 = sor.u32 256, 104
        %1862 = vbcast.lane.b32.xlu0 %v1808, %s1861
        %v1863 = vpop.permute.xlu0 %1862
        %s1865 = sor.u32 256, 112
        %1866 = vbcast.lane.b32.xlu0 %v1808, %s1865
        %v1867 = vpop.permute.xlu0 %1866
        %s1869 = sor.u32 256, 120
        %1870 = vbcast.lane.b32.xlu0 %v1808, %s1869
        %v1871 = vpop.permute.xlu0 %1870
        %v1872 = vlaneseq
        %v1873 = vshrl.u32 %v1872, 7
        %v1874 = vsub.s32 0, %v1873
        %v1875 = vrot.slane %v1802, %v1874
        %1877 = vbcast.lane.b32.xlu0 %v1875, 256
        %v1878 = vpop.permute.xlu0 %1877
        %s1880 = sor.u32 256, 8
        %1881 = vbcast.lane.b32.xlu0 %v1875, %s1880
        %v1882 = vpop.permute.xlu0 %1881
        %s1884 = sor.u32 256, 16
        %1885 = vbcast.lane.b32.xlu0 %v1875, %s1884
        %v1886 = vpop.permute.xlu0 %1885
        %s1888 = sor.u32 256, 24
        %1889 = vbcast.lane.b32.xlu0 %v1875, %s1888
        %v1890 = vpop.permute.xlu0 %1889
        %s1892 = sor.u32 256, 32
        %1893 = vbcast.lane.b32.xlu0 %v1875, %s1892
        %v1894 = vpop.permute.xlu0 %1893
        %s1896 = sor.u32 256, 40
        %1897 = vbcast.lane.b32.xlu0 %v1875, %s1896
        %v1898 = vpop.permute.xlu0 %1897
        %s1900 = sor.u32 256, 48
        %1901 = vbcast.lane.b32.xlu0 %v1875, %s1900
        %v1902 = vpop.permute.xlu0 %1901
        %s1904 = sor.u32 256, 56
        %1905 = vbcast.lane.b32.xlu0 %v1875, %s1904
        %v1906 = vpop.permute.xlu0 %1905
        %s1908 = sor.u32 256, 64
        %1909 = vbcast.lane.b32.xlu0 %v1875, %s1908
        %v1910 = vpop.permute.xlu0 %1909
        %s1912 = sor.u32 256, 72
        %1913 = vbcast.lane.b32.xlu0 %v1875, %s1912
        %v1914 = vpop.permute.xlu0 %1913
        %s1916 = sor.u32 256, 80
        %1917 = vbcast.lane.b32.xlu0 %v1875, %s1916
        %v1918 = vpop.permute.xlu0 %1917
        %s1920 = sor.u32 256, 88
        %1921 = vbcast.lane.b32.xlu0 %v1875, %s1920
        %v1922 = vpop.permute.xlu0 %1921
        %s1924 = sor.u32 256, 96
        %1925 = vbcast.lane.b32.xlu0 %v1875, %s1924
        %v1926 = vpop.permute.xlu0 %1925
        %s1928 = sor.u32 256, 104
        %1929 = vbcast.lane.b32.xlu0 %v1875, %s1928
        %v1930 = vpop.permute.xlu0 %1929
        %s1932 = sor.u32 256, 112
        %1933 = vbcast.lane.b32.xlu0 %v1875, %s1932
        %v1934 = vpop.permute.xlu0 %1933
        %s1936 = sor.u32 256, 120
        %1937 = vbcast.lane.b32.xlu0 %v1875, %s1936
        %v1938 = vpop.permute.xlu0 %1937
        %v1939 = vlaneseq
        %v1940 = vshrl.u32 %v1939, 7
        %v1941 = vsub.s32 0, %v1940
        %v1942 = vrot.slane %v1804, %v1941
        %1944 = vbcast.lane.b32.xlu0 %v1942, 256
        %v1945 = vpop.permute.xlu0 %1944
        %s1947 = sor.u32 256, 8
        %1948 = vbcast.lane.b32.xlu0 %v1942, %s1947
        %v1949 = vpop.permute.xlu0 %1948
        %s1951 = sor.u32 256, 16
        %1952 = vbcast.lane.b32.xlu0 %v1942, %s1951
        %v1953 = vpop.permute.xlu0 %1952
        %s1955 = sor.u32 256, 24
        %1956 = vbcast.lane.b32.xlu0 %v1942, %s1955
        %v1957 = vpop.permute.xlu0 %1956
        %s1959 = sor.u32 256, 32
        %1960 = vbcast.lane.b32.xlu0 %v1942, %s1959
        %v1961 = vpop.permute.xlu0 %1960
        %s1963 = sor.u32 256, 40
        %1964 = vbcast.lane.b32.xlu0 %v1942, %s1963
        %v1965 = vpop.permute.xlu0 %1964
        %s1967 = sor.u32 256, 48
        %1968 = vbcast.lane.b32.xlu0 %v1942, %s1967
        %v1969 = vpop.permute.xlu0 %1968
        %s1971 = sor.u32 256, 56
        %1972 = vbcast.lane.b32.xlu0 %v1942, %s1971
        %v1973 = vpop.permute.xlu0 %1972
        %v1974 = vmul.f32 %v202, %v1811
        %v1975 = vmul.f32 %v203, %v1811
        %v1976 = vmul.f32 %v204, %v1811
        %v1977 = vmul.f32 %v205, %v1811
        %v1978 = vmul.f32 %v206, %v1811
        %v1979 = vmul.f32 %v207, %v1811
        %v1980 = vmul.f32 %v208, %v1815
        %v1981 = vmul.f32 %v209, %v1815
        %v1982 = vmul.f32 %v210, %v1815
        %v1983 = vmul.f32 %v211, %v1815
        %v1984 = vmul.f32 %v212, %v1815
        %v1985 = vmul.f32 %v213, %v1815
        %v1986 = vmul.f32 %v214, %v1819
        %v1987 = vmul.f32 %v215, %v1819
        %v1988 = vmul.f32 %v216, %v1819
        %v1989 = vmul.f32 %v217, %v1819
        %v1990 = vmul.f32 %v218, %v1819
        %v1991 = vmul.f32 %v219, %v1819
        %v1992 = vmul.f32 %v220, %v1823
        %v1993 = vmul.f32 %v221, %v1823
        %v1994 = vmul.f32 %v222, %v1823
        %v1995 = vmul.f32 %v223, %v1823
        %v1996 = vmul.f32 %v224, %v1823
        %v1997 = vmul.f32 %v225, %v1823
        %v1998 = vmul.f32 %v226, %v1827
        %v1999 = vmul.f32 %v227, %v1827
        %v2000 = vmul.f32 %v228, %v1827
        %v2001 = vmul.f32 %v229, %v1827
        %v2002 = vmul.f32 %v230, %v1827
        %v2003 = vmul.f32 %v231, %v1827
        %v2004 = vmul.f32 %v232, %v1831
        %v2005 = vmul.f32 %v233, %v1831
        %v2006 = vmul.f32 %v234, %v1831
        %v2007 = vmul.f32 %v235, %v1831
        %v2008 = vmul.f32 %v236, %v1831
        %v2009 = vmul.f32 %v237, %v1831
        %v2010 = vmul.f32 %v238, %v1835
        %v2011 = vmul.f32 %v239, %v1835
        %v2012 = vmul.f32 %v240, %v1835
        %v2013 = vmul.f32 %v241, %v1835
        %v2014 = vmul.f32 %v242, %v1835
        %v2015 = vmul.f32 %v243, %v1835
        %v2016 = vmul.f32 %v244, %v1839
        %v2017 = vmul.f32 %v245, %v1839
        %v2018 = vmul.f32 %v246, %v1839
        %v2019 = vmul.f32 %v247, %v1839
        %v2020 = vmul.f32 %v248, %v1839
        %v2021 = vmul.f32 %v249, %v1839
        %v2022 = vmul.f32 %v250, %v1843
        %v2023 = vmul.f32 %v251, %v1843
        %v2024 = vmul.f32 %v252, %v1843
        %v2025 = vmul.f32 %v253, %v1843
        %v2026 = vmul.f32 %v254, %v1843
        %v2027 = vmul.f32 %v255, %v1843
        %v2028 = vmul.f32 %v256, %v1847
        %v2029 = vmul.f32 %v257, %v1847
        %v2030 = vmul.f32 %v258, %v1847
        %v2031 = vmul.f32 %v259, %v1847
        %v2032 = vmul.f32 %v260, %v1847
        %v2033 = vmul.f32 %v261, %v1847
        %v2034 = vmul.f32 %v262, %v1851
        %v2035 = vmul.f32 %v263, %v1851
        %v2036 = vmul.f32 %v264, %v1851
        %v2037 = vmul.f32 %v265, %v1851
        %v2038 = vmul.f32 %v266, %v1851
        %v2039 = vmul.f32 %v267, %v1851
        %v2040 = vmul.f32 %v268, %v1855
        %v2041 = vmul.f32 %v269, %v1855
        %v2042 = vmul.f32 %v270, %v1855
        %v2043 = vmul.f32 %v271, %v1855
        %v2044 = vmul.f32 %v272, %v1855
        %v2045 = vmul.f32 %v273, %v1855
        %v2046 = vmul.f32 %v274, %v1859
        %v2047 = vmul.f32 %v275, %v1859
        %v2048 = vmul.f32 %v276, %v1859
        %v2049 = vmul.f32 %v277, %v1859
        %v2050 = vmul.f32 %v278, %v1859
        %v2051 = vmul.f32 %v279, %v1859
        %v2052 = vmul.f32 %v280, %v1863
        %v2053 = vmul.f32 %v281, %v1863
        %v2054 = vmul.f32 %v282, %v1863
        %v2055 = vmul.f32 %v283, %v1863
        %v2056 = vmul.f32 %v284, %v1863
        %v2057 = vmul.f32 %v285, %v1863
        %v2058 = vmul.f32 %v286, %v1867
        %v2059 = vmul.f32 %v287, %v1867
        %v2060 = vmul.f32 %v288, %v1867
        %v2061 = vmul.f32 %v289, %v1867
        %v2062 = vmul.f32 %v290, %v1867
        %v2063 = vmul.f32 %v291, %v1867
        %v2064 = vmul.f32 %v292, %v1871
        %v2065 = vmul.f32 %v293, %v1871
        %v2066 = vmul.f32 %v294, %v1871
        %v2067 = vmul.f32 %v295, %v1871
        %v2068 = vmul.f32 %v296, %v1871
        %v2069 = vmul.f32 %v297, %v1871
        %v2070 = vmul.f32 %v298, %v1878
        %v2071 = vmul.f32 %v299, %v1878
        %v2072 = vmul.f32 %v300, %v1878
        %v2073 = vmul.f32 %v301, %v1878
        %v2074 = vmul.f32 %v302, %v1878
        %v2075 = vmul.f32 %v303, %v1878
        %v2076 = vmul.f32 %v304, %v1882
        %v2077 = vmul.f32 %v305, %v1882
        %v2078 = vmul.f32 %v306, %v1882
        %v2079 = vmul.f32 %v307, %v1882
        %v2080 = vmul.f32 %v308, %v1882
        %v2081 = vmul.f32 %v309, %v1882
        %v2082 = vmul.f32 %v310, %v1886
        %v2083 = vmul.f32 %v311, %v1886
        %v2084 = vmul.f32 %v312, %v1886
        %v2085 = vmul.f32 %v313, %v1886
        %v2086 = vmul.f32 %v314, %v1886
        %v2087 = vmul.f32 %v315, %v1886
        %v2088 = vmul.f32 %v316, %v1890
        %v2089 = vmul.f32 %v317, %v1890
        %v2090 = vmul.f32 %v318, %v1890
        %v2091 = vmul.f32 %v319, %v1890
        %v2092 = vmul.f32 %v320, %v1890
        %v2093 = vmul.f32 %v321, %v1890
        %v2094 = vmul.f32 %v322, %v1894
        %v2095 = vmul.f32 %v323, %v1894
        %v2096 = vmul.f32 %v324, %v1894
        %v2097 = vmul.f32 %v325, %v1894
        %v2098 = vmul.f32 %v326, %v1894
        %v2099 = vmul.f32 %v327, %v1894
        %v2100 = vmul.f32 %v328, %v1898
        %v2101 = vmul.f32 %v329, %v1898
        %v2102 = vmul.f32 %v330, %v1898
        %v2103 = vmul.f32 %v331, %v1898
        %v2104 = vmul.f32 %v332, %v1898
        %v2105 = vmul.f32 %v333, %v1898
        %v2106 = vmul.f32 %v334, %v1902
        %v2107 = vmul.f32 %v335, %v1902
        %v2108 = vmul.f32 %v336, %v1902
        %v2109 = vmul.f32 %v337, %v1902
        %v2110 = vmul.f32 %v338, %v1902
        %v2111 = vmul.f32 %v339, %v1902
        %v2112 = vmul.f32 %v340, %v1906
        %v2113 = vmul.f32 %v341, %v1906
        %v2114 = vmul.f32 %v342, %v1906
        %v2115 = vmul.f32 %v343, %v1906
        %v2116 = vmul.f32 %v344, %v1906
        %v2117 = vmul.f32 %v345, %v1906
        %v2118 = vmul.f32 %v346, %v1910
        %v2119 = vmul.f32 %v347, %v1910
        %v2120 = vmul.f32 %v348, %v1910
        %v2121 = vmul.f32 %v349, %v1910
        %v2122 = vmul.f32 %v350, %v1910
        %v2123 = vmul.f32 %v351, %v1910
        %v2124 = vmul.f32 %v352, %v1914
        %v2125 = vmul.f32 %v353, %v1914
        %v2126 = vmul.f32 %v354, %v1914
        %v2127 = vmul.f32 %v355, %v1914
        %v2128 = vmul.f32 %v356, %v1914
        %v2129 = vmul.f32 %v357, %v1914
        %v2130 = vmul.f32 %v358, %v1918
        %v2131 = vmul.f32 %v359, %v1918
        %v2132 = vmul.f32 %v360, %v1918
        %v2133 = vmul.f32 %v361, %v1918
        %v2134 = vmul.f32 %v362, %v1918
        %v2135 = vmul.f32 %v363, %v1918
        %v2136 = vmul.f32 %v364, %v1922
        %v2137 = vmul.f32 %v365, %v1922
        %v2138 = vmul.f32 %v366, %v1922
        %v2139 = vmul.f32 %v367, %v1922
        %v2140 = vmul.f32 %v368, %v1922
        %v2141 = vmul.f32 %v369, %v1922
        %v2142 = vmul.f32 %v370, %v1926
        %v2143 = vmul.f32 %v371, %v1926
        %v2144 = vmul.f32 %v372, %v1926
        %v2145 = vmul.f32 %v373, %v1926
        %v2146 = vmul.f32 %v374, %v1926
        %v2147 = vmul.f32 %v375, %v1926
        %v2148 = vmul.f32 %v376, %v1930
        %v2149 = vmul.f32 %v377, %v1930
        %v2150 = vmul.f32 %v378, %v1930
        %v2151 = vmul.f32 %v379, %v1930
        %v2152 = vmul.f32 %v380, %v1930
        %v2153 = vmul.f32 %v381, %v1930
        %v2154 = vmul.f32 %v382, %v1934
        %v2155 = vmul.f32 %v383, %v1934
        %v2156 = vmul.f32 %v384, %v1934
        %v2157 = vmul.f32 %v385, %v1934
        %v2158 = vmul.f32 %v386, %v1934
        %v2159 = vmul.f32 %v387, %v1934
        %v2160 = vmul.f32 %v388, %v1938
        %v2161 = vmul.f32 %v389, %v1938
        %v2162 = vmul.f32 %v390, %v1938
        %v2163 = vmul.f32 %v391, %v1938
        %v2164 = vmul.f32 %v392, %v1938
        %v2165 = vmul.f32 %v393, %v1938
        %v2166 = vmul.f32 %v394, %v1945
        %v2167 = vmul.f32 %v395, %v1945
        %v2168 = vmul.f32 %v396, %v1945
        %v2169 = vmul.f32 %v397, %v1945
        %v2170 = vmul.f32 %v398, %v1945
        %v2171 = vmul.f32 %v399, %v1945
        %v2172 = vmul.f32 %v400, %v1949
        %v2173 = vmul.f32 %v401, %v1949
        %v2174 = vmul.f32 %v402, %v1949
        %v2175 = vmul.f32 %v403, %v1949
        %v2176 = vmul.f32 %v404, %v1949
        %v2177 = vmul.f32 %v405, %v1949
        %v2178 = vmul.f32 %v406, %v1953
        %v2179 = vmul.f32 %v407, %v1953
        %v2180 = vmul.f32 %v408, %v1953
        %v2181 = vmul.f32 %v409, %v1953
        %v2182 = vmul.f32 %v410, %v1953
        %v2183 = vmul.f32 %v411, %v1953
        %v2184 = vmul.f32 %v412, %v1957
        %v2185 = vmul.f32 %v413, %v1957
        %v2186 = vmul.f32 %v414, %v1957
        %v2187 = vmul.f32 %v415, %v1957
        %v2188 = vmul.f32 %v416, %v1957
        %v2189 = vmul.f32 %v417, %v1957
        %v2190 = vmul.f32 %v418, %v1961
        %v2191 = vmul.f32 %v419, %v1961
        %v2192 = vmul.f32 %v420, %v1961
        %v2193 = vmul.f32 %v421, %v1961
        %v2194 = vmul.f32 %v422, %v1961
        %v2195 = vmul.f32 %v423, %v1961
        %v2196 = vmul.f32 %v424, %v1965
        %v2197 = vmul.f32 %v425, %v1965
        %v2198 = vmul.f32 %v426, %v1965
        %v2199 = vmul.f32 %v427, %v1965
        %v2200 = vmul.f32 %v428, %v1965
        %v2201 = vmul.f32 %v429, %v1965
        %v2202 = vmul.f32 %v430, %v1969
        %v2203 = vmul.f32 %v431, %v1969
        %v2204 = vmul.f32 %v432, %v1969
        %v2205 = vmul.f32 %v433, %v1969
        %v2206 = vmul.f32 %v434, %v1969
        %v2207 = vmul.f32 %v435, %v1969
        %v2208 = vmul.f32 %v436, %v1973
        %v2209 = vmul.f32 %v437, %v1973
        %v2210 = vmul.f32 %v438, %v1973
        %v2211 = vmul.f32 %v439, %v1973
        %v2212 = vmul.f32 %v440, %v1973
        %v2213 = vmul.f32 %v441, %v1973
        %2214 = vst [vmem:[%s201] sm:$0xff] %v1974
        %2215 = vst [vmem:[%s201 + $0x8] sm:$0xff] %v1975
        %2216 = vst [vmem:[%s201 + $0x10] sm:$0xff] %v1976
        %2217 = vst [vmem:[%s201 + $0x18] sm:$0xff] %v1977
        %2218 = vst [vmem:[%s201 + $0x20] sm:$0xff] %v1978
        %2219 = vst [vmem:[%s201 + $0x28] sm:$0xff] %v1979
        %2220 = vst [vmem:[%s201 + $0x30] sm:$0xff] %v1980
        %2221 = vst [vmem:[%s201 + $0x38] sm:$0xff] %v1981
        %2222 = vst [vmem:[%s201 + $0x40] sm:$0xff] %v1982
        %2223 = vst [vmem:[%s201 + $0x48] sm:$0xff] %v1983
        %2224 = vst [vmem:[%s201 + $0x50] sm:$0xff] %v1984
        %2225 = vst [vmem:[%s201 + $0x58] sm:$0xff] %v1985
        %2226 = vst [vmem:[%s201 + $0x60] sm:$0xff] %v1986
        %2227 = vst [vmem:[%s201 + $0x68] sm:$0xff] %v1987
        %2228 = vst [vmem:[%s201 + $0x70] sm:$0xff] %v1988
        %2229 = vst [vmem:[%s201 + $0x78] sm:$0xff] %v1989
        %2230 = vst [vmem:[%s201 + $0x80] sm:$0xff] %v1990
        %2231 = vst [vmem:[%s201 + $0x88] sm:$0xff] %v1991
        %2232 = vst [vmem:[%s201 + $0x90] sm:$0xff] %v1992
        %2233 = vst [vmem:[%s201 + $0x98] sm:$0xff] %v1993
        %2234 = vst [vmem:[%s201 + $0xa0] sm:$0xff] %v1994
        %2235 = vst [vmem:[%s201 + $0xa8] sm:$0xff] %v1995
        %2236 = vst [vmem:[%s201 + $0xb0] sm:$0xff] %v1996
        %2237 = vst [vmem:[%s201 + $0xb8] sm:$0xff] %v1997
        %2238 = vst [vmem:[%s201 + $0xc0] sm:$0xff] %v1998
        %2239 = vst [vmem:[%s201 + $0xc8] sm:$0xff] %v1999
        %2240 = vst [vmem:[%s201 + $0xd0] sm:$0xff] %v2000
        %2241 = vst [vmem:[%s201 + $0xd8] sm:$0xff] %v2001
        %2242 = vst [vmem:[%s201 + $0xe0] sm:$0xff] %v2002
        %2243 = vst [vmem:[%s201 + $0xe8] sm:$0xff] %v2003
        %2244 = vst [vmem:[%s201 + $0xf0] sm:$0xff] %v2004
        %2245 = vst [vmem:[%s201 + $0xf8] sm:$0xff] %v2005
        %2246 = vst [vmem:[%s201 + $0x100] sm:$0xff] %v2006
        %2247 = vst [vmem:[%s201 + $0x108] sm:$0xff] %v2007
        %2248 = vst [vmem:[%s201 + $0x110] sm:$0xff] %v2008
        %2249 = vst [vmem:[%s201 + $0x118] sm:$0xff] %v2009
        %2250 = vst [vmem:[%s201 + $0x120] sm:$0xff] %v2010
        %2251 = vst [vmem:[%s201 + $0x128] sm:$0xff] %v2011
        %2252 = vst [vmem:[%s201 + $0x130] sm:$0xff] %v2012
        %2253 = vst [vmem:[%s201 + $0x138] sm:$0xff] %v2013
        %2254 = vst [vmem:[%s201 + $0x140] sm:$0xff] %v2014
        %2255 = vst [vmem:[%s201 + $0x148] sm:$0xff] %v2015
        %2256 = vst [vmem:[%s201 + $0x150] sm:$0xff] %v2016
        %2257 = vst [vmem:[%s201 + $0x158] sm:$0xff] %v2017
        %2258 = vst [vmem:[%s201 + $0x160] sm:$0xff] %v2018
        %2259 = vst [vmem:[%s201 + $0x168] sm:$0xff] %v2019
        %2260 = vst [vmem:[%s201 + $0x170] sm:$0xff] %v2020
        %2261 = vst [vmem:[%s201 + $0x178] sm:$0xff] %v2021
        %2262 = vst [vmem:[%s201 + $0x180] sm:$0xff] %v2022
        %2263 = vst [vmem:[%s201 + $0x188] sm:$0xff] %v2023
        %2264 = vst [vmem:[%s201 + $0x190] sm:$0xff] %v2024
        %2265 = vst [vmem:[%s201 + $0x198] sm:$0xff] %v2025
        %2266 = vst [vmem:[%s201 + $0x1a0] sm:$0xff] %v2026
        %2267 = vst [vmem:[%s201 + $0x1a8] sm:$0xff] %v2027
        %2268 = vst [vmem:[%s201 + $0x1b0] sm:$0xff] %v2028
        %2269 = vst [vmem:[%s201 + $0x1b8] sm:$0xff] %v2029
        %2270 = vst [vmem:[%s201 + $0x1c0] sm:$0xff] %v2030
        %2271 = vst [vmem:[%s201 + $0x1c8] sm:$0xff] %v2031
        %2272 = vst [vmem:[%s201 + $0x1d0] sm:$0xff] %v2032
        %2273 = vst [vmem:[%s201 + $0x1d8] sm:$0xff] %v2033
        %2274 = vst [vmem:[%s201 + $0x1e0] sm:$0xff] %v2034
        %2275 = vst [vmem:[%s201 + $0x1e8] sm:$0xff] %v2035
        %2276 = vst [vmem:[%s201 + $0x1f0] sm:$0xff] %v2036
        %2277 = vst [vmem:[%s201 + $0x1f8] sm:$0xff] %v2037
        %2278 = vst [vmem:[%s201 + $0x200] sm:$0xff] %v2038
        %2279 = vst [vmem:[%s201 + $0x208] sm:$0xff] %v2039
        %2280 = vst [vmem:[%s201 + $0x210] sm:$0xff] %v2040
        %2281 = vst [vmem:[%s201 + $0x218] sm:$0xff] %v2041
        %2282 = vst [vmem:[%s201 + $0x220] sm:$0xff] %v2042
        %2283 = vst [vmem:[%s201 + $0x228] sm:$0xff] %v2043
        %2284 = vst [vmem:[%s201 + $0x230] sm:$0xff] %v2044
        %2285 = vst [vmem:[%s201 + $0x238] sm:$0xff] %v2045
        %2286 = vst [vmem:[%s201 + $0x240] sm:$0xff] %v2046
        %2287 = vst [vmem:[%s201 + $0x248] sm:$0xff] %v2047
        %2288 = vst [vmem:[%s201 + $0x250] sm:$0xff] %v2048
        %2289 = vst [vmem:[%s201 + $0x258] sm:$0xff] %v2049
        %2290 = vst [vmem:[%s201 + $0x260] sm:$0xff] %v2050
        %2291 = vst [vmem:[%s201 + $0x268] sm:$0xff] %v2051
        %2292 = vst [vmem:[%s201 + $0x270] sm:$0xff] %v2052
        %2293 = vst [vmem:[%s201 + $0x278] sm:$0xff] %v2053
        %2294 = vst [vmem:[%s201 + $0x280] sm:$0xff] %v2054
        %2295 = vst [vmem:[%s201 + $0x288] sm:$0xff] %v2055
        %2296 = vst [vmem:[%s201 + $0x290] sm:$0xff] %v2056
        %2297 = vst [vmem:[%s201 + $0x298] sm:$0xff] %v2057
        %2298 = vst [vmem:[%s201 + $0x2a0] sm:$0xff] %v2058
        %2299 = vst [vmem:[%s201 + $0x2a8] sm:$0xff] %v2059
        %2300 = vst [vmem:[%s201 + $0x2b0] sm:$0xff] %v2060
        %2301 = vst [vmem:[%s201 + $0x2b8] sm:$0xff] %v2061
        %2302 = vst [vmem:[%s201 + $0x2c0] sm:$0xff] %v2062
        %2303 = vst [vmem:[%s201 + $0x2c8] sm:$0xff] %v2063
        %2304 = vst [vmem:[%s201 + $0x2d0] sm:$0xff] %v2064
        %2305 = vst [vmem:[%s201 + $0x2d8] sm:$0xff] %v2065
        %2306 = vst [vmem:[%s201 + $0x2e0] sm:$0xff] %v2066
        %2307 = vst [vmem:[%s201 + $0x2e8] sm:$0xff] %v2067
        %2308 = vst [vmem:[%s201 + $0x2f0] sm:$0xff] %v2068
        %2309 = vst [vmem:[%s201 + $0x2f8] sm:$0xff] %v2069
        %2310 = vst [vmem:[%s201 + $0x300] sm:$0xff] %v2070
        %2311 = vst [vmem:[%s201 + $0x308] sm:$0xff] %v2071
        %2312 = vst [vmem:[%s201 + $0x310] sm:$0xff] %v2072
        %2313 = vst [vmem:[%s201 + $0x318] sm:$0xff] %v2073
        %2314 = vst [vmem:[%s201 + $0x320] sm:$0xff] %v2074
        %2315 = vst [vmem:[%s201 + $0x328] sm:$0xff] %v2075
        %2316 = vst [vmem:[%s201 + $0x330] sm:$0xff] %v2076
        %2317 = vst [vmem:[%s201 + $0x338] sm:$0xff] %v2077
        %2318 = vst [vmem:[%s201 + $0x340] sm:$0xff] %v2078
        %2319 = vst [vmem:[%s201 + $0x348] sm:$0xff] %v2079
        %2320 = vst [vmem:[%s201 + $0x350] sm:$0xff] %v2080
        %2321 = vst [vmem:[%s201 + $0x358] sm:$0xff] %v2081
        %2322 = vst [vmem:[%s201 + $0x360] sm:$0xff] %v2082
        %2323 = vst [vmem:[%s201 + $0x368] sm:$0xff] %v2083
        %2324 = vst [vmem:[%s201 + $0x370] sm:$0xff] %v2084
        %2325 = vst [vmem:[%s201 + $0x378] sm:$0xff] %v2085
        %2326 = vst [vmem:[%s201 + $0x380] sm:$0xff] %v2086
        %2327 = vst [vmem:[%s201 + $0x388] sm:$0xff] %v2087
        %2328 = vst [vmem:[%s201 + $0x390] sm:$0xff] %v2088
        %2329 = vst [vmem:[%s201 + $0x398] sm:$0xff] %v2089
        %2330 = vst [vmem:[%s201 + $0x3a0] sm:$0xff] %v2090
        %2331 = vst [vmem:[%s201 + $0x3a8] sm:$0xff] %v2091
        %2332 = vst [vmem:[%s201 + $0x3b0] sm:$0xff] %v2092
        %2333 = vst [vmem:[%s201 + $0x3b8] sm:$0xff] %v2093
        %2334 = vst [vmem:[%s201 + $0x3c0] sm:$0xff] %v2094
        %2335 = vst [vmem:[%s201 + $0x3c8] sm:$0xff] %v2095
        %2336 = vst [vmem:[%s201 + $0x3d0] sm:$0xff] %v2096
        %2337 = vst [vmem:[%s201 + $0x3d8] sm:$0xff] %v2097
        %2338 = vst [vmem:[%s201 + $0x3e0] sm:$0xff] %v2098
        %2339 = vst [vmem:[%s201 + $0x3e8] sm:$0xff] %v2099
        %2340 = vst [vmem:[%s201 + $0x3f0] sm:$0xff] %v2100
        %2341 = vst [vmem:[%s201 + $0x3f8] sm:$0xff] %v2101
        %2342 = vst [vmem:[%s201 + $0x400] sm:$0xff] %v2102
        %2343 = vst [vmem:[%s201 + $0x408] sm:$0xff] %v2103
        %2344 = vst [vmem:[%s201 + $0x410] sm:$0xff] %v2104
        %2345 = vst [vmem:[%s201 + $0x418] sm:$0xff] %v2105
        %2346 = vst [vmem:[%s201 + $0x420] sm:$0xff] %v2106
        %2347 = vst [vmem:[%s201 + $0x428] sm:$0xff] %v2107
        %2348 = vst [vmem:[%s201 + $0x430] sm:$0xff] %v2108
        %2349 = vst [vmem:[%s201 + $0x438] sm:$0xff] %v2109
        %2350 = vst [vmem:[%s201 + $0x440] sm:$0xff] %v2110
        %2351 = vst [vmem:[%s201 + $0x448] sm:$0xff] %v2111
        %2352 = vst [vmem:[%s201 + $0x450] sm:$0xff] %v2112
        %2353 = vst [vmem:[%s201 + $0x458] sm:$0xff] %v2113
        %2354 = vst [vmem:[%s201 + $0x460] sm:$0xff] %v2114
        %2355 = vst [vmem:[%s201 + $0x468] sm:$0xff] %v2115
        %2356 = vst [vmem:[%s201 + $0x470] sm:$0xff] %v2116
        %2357 = vst [vmem:[%s201 + $0x478] sm:$0xff] %v2117
        %2358 = vst [vmem:[%s201 + $0x480] sm:$0xff] %v2118
        %2359 = vst [vmem:[%s201 + $0x488] sm:$0xff] %v2119
        %2360 = vst [vmem:[%s201 + $0x490] sm:$0xff] %v2120
        %2361 = vst [vmem:[%s201 + $0x498] sm:$0xff] %v2121
        %2362 = vst [vmem:[%s201 + $0x4a0] sm:$0xff] %v2122
        %2363 = vst [vmem:[%s201 + $0x4a8] sm:$0xff] %v2123
        %2364 = vst [vmem:[%s201 + $0x4b0] sm:$0xff] %v2124
        %2365 = vst [vmem:[%s201 + $0x4b8] sm:$0xff] %v2125
        %2366 = vst [vmem:[%s201 + $0x4c0] sm:$0xff] %v2126
        %2367 = vst [vmem:[%s201 + $0x4c8] sm:$0xff] %v2127
        %2368 = vst [vmem:[%s201 + $0x4d0] sm:$0xff] %v2128
        %2369 = vst [vmem:[%s201 + $0x4d8] sm:$0xff] %v2129
        %2370 = vst [vmem:[%s201 + $0x4e0] sm:$0xff] %v2130
        %2371 = vst [vmem:[%s201 + $0x4e8] sm:$0xff] %v2131
        %2372 = vst [vmem:[%s201 + $0x4f0] sm:$0xff] %v2132
        %2373 = vst [vmem:[%s201 + $0x4f8] sm:$0xff] %v2133
        %2374 = vst [vmem:[%s201 + $0x500] sm:$0xff] %v2134
        %2375 = vst [vmem:[%s201 + $0x508] sm:$0xff] %v2135
        %2376 = vst [vmem:[%s201 + $0x510] sm:$0xff] %v2136
        %2377 = vst [vmem:[%s201 + $0x518] sm:$0xff] %v2137
        %2378 = vst [vmem:[%s201 + $0x520] sm:$0xff] %v2138
        %2379 = vst [vmem:[%s201 + $0x528] sm:$0xff] %v2139
        %2380 = vst [vmem:[%s201 + $0x530] sm:$0xff] %v2140
        %2381 = vst [vmem:[%s201 + $0x538] sm:$0xff] %v2141
        %2382 = vst [vmem:[%s201 + $0x540] sm:$0xff] %v2142
        %2383 = vst [vmem:[%s201 + $0x548] sm:$0xff] %v2143
        %2384 = vst [vmem:[%s201 + $0x550] sm:$0xff] %v2144
        %2385 = vst [vmem:[%s201 + $0x558] sm:$0xff] %v2145
        %2386 = vst [vmem:[%s201 + $0x560] sm:$0xff] %v2146
        %2387 = vst [vmem:[%s201 + $0x568] sm:$0xff] %v2147
        %2388 = vst [vmem:[%s201 + $0x570] sm:$0xff] %v2148
        %2389 = vst [vmem:[%s201 + $0x578] sm:$0xff] %v2149
        %2390 = vst [vmem:[%s201 + $0x580] sm:$0xff] %v2150
        %2391 = vst [vmem:[%s201 + $0x588] sm:$0xff] %v2151
        %2392 = vst [vmem:[%s201 + $0x590] sm:$0xff] %v2152
        %2393 = vst [vmem:[%s201 + $0x598] sm:$0xff] %v2153
        %2394 = vst [vmem:[%s201 + $0x5a0] sm:$0xff] %v2154
        %2395 = vst [vmem:[%s201 + $0x5a8] sm:$0xff] %v2155
        %2396 = vst [vmem:[%s201 + $0x5b0] sm:$0xff] %v2156
        %2397 = vst [vmem:[%s201 + $0x5b8] sm:$0xff] %v2157
        %2398 = vst [vmem:[%s201 + $0x5c0] sm:$0xff] %v2158
        %2399 = vst [vmem:[%s201 + $0x5c8] sm:$0xff] %v2159
        %2400 = vst [vmem:[%s201 + $0x5d0] sm:$0xff] %v2160
        %2401 = vst [vmem:[%s201 + $0x5d8] sm:$0xff] %v2161
        %2402 = vst [vmem:[%s201 + $0x5e0] sm:$0xff] %v2162
        %2403 = vst [vmem:[%s201 + $0x5e8] sm:$0xff] %v2163
        %2404 = vst [vmem:[%s201 + $0x5f0] sm:$0xff] %v2164
        %2405 = vst [vmem:[%s201 + $0x5f8] sm:$0xff] %v2165
        %2406 = vst [vmem:[%s201 + $0x600] sm:$0xff] %v2166
        %2407 = vst [vmem:[%s201 + $0x608] sm:$0xff] %v2167
        %2408 = vst [vmem:[%s201 + $0x610] sm:$0xff] %v2168
        %2409 = vst [vmem:[%s201 + $0x618] sm:$0xff] %v2169
        %2410 = vst [vmem:[%s201 + $0x620] sm:$0xff] %v2170
        %2411 = vst [vmem:[%s201 + $0x628] sm:$0xff] %v2171
        %2412 = vst [vmem:[%s201 + $0x630] sm:$0xff] %v2172
        %2413 = vst [vmem:[%s201 + $0x638] sm:$0xff] %v2173
        %2414 = vst [vmem:[%s201 + $0x640] sm:$0xff] %v2174
        %2415 = vst [vmem:[%s201 + $0x648] sm:$0xff] %v2175
        %2416 = vst [vmem:[%s201 + $0x650] sm:$0xff] %v2176
        %2417 = vst [vmem:[%s201 + $0x658] sm:$0xff] %v2177
        %2418 = vst [vmem:[%s201 + $0x660] sm:$0xff] %v2178
        %2419 = vst [vmem:[%s201 + $0x668] sm:$0xff] %v2179
        %2420 = vst [vmem:[%s201 + $0x670] sm:$0xff] %v2180
        %2421 = vst [vmem:[%s201 + $0x678] sm:$0xff] %v2181
        %2422 = vst [vmem:[%s201 + $0x680] sm:$0xff] %v2182
        %2423 = vst [vmem:[%s201 + $0x688] sm:$0xff] %v2183
        %2424 = vst [vmem:[%s201 + $0x690] sm:$0xff] %v2184
        %2425 = vst [vmem:[%s201 + $0x698] sm:$0xff] %v2185
        %2426 = vst [vmem:[%s201 + $0x6a0] sm:$0xff] %v2186
        %2427 = vst [vmem:[%s201 + $0x6a8] sm:$0xff] %v2187
        %2428 = vst [vmem:[%s201 + $0x6b0] sm:$0xff] %v2188
        %2429 = vst [vmem:[%s201 + $0x6b8] sm:$0xff] %v2189
        %2430 = vst [vmem:[%s201 + $0x6c0] sm:$0xff] %v2190
        %2431 = vst [vmem:[%s201 + $0x6c8] sm:$0xff] %v2191
        %2432 = vst [vmem:[%s201 + $0x6d0] sm:$0xff] %v2192
        %2433 = vst [vmem:[%s201 + $0x6d8] sm:$0xff] %v2193
        %2434 = vst [vmem:[%s201 + $0x6e0] sm:$0xff] %v2194
        %2435 = vst [vmem:[%s201 + $0x6e8] sm:$0xff] %v2195
        %2436 = vst [vmem:[%s201 + $0x6f0] sm:$0xff] %v2196
        %2437 = vst [vmem:[%s201 + $0x6f8] sm:$0xff] %v2197
        %2438 = vst [vmem:[%s201 + $0x700] sm:$0xff] %v2198
        %2439 = vst [vmem:[%s201 + $0x708] sm:$0xff] %v2199
        %2440 = vst [vmem:[%s201 + $0x710] sm:$0xff] %v2200
        %2441 = vst [vmem:[%s201 + $0x718] sm:$0xff] %v2201
        %2442 = vst [vmem:[%s201 + $0x720] sm:$0xff] %v2202
        %2443 = vst [vmem:[%s201 + $0x728] sm:$0xff] %v2203
        %2444 = vst [vmem:[%s201 + $0x730] sm:$0xff] %v2204
        %2445 = vst [vmem:[%s201 + $0x738] sm:$0xff] %v2205
        %2446 = vst [vmem:[%s201 + $0x740] sm:$0xff] %v2206
        %2447 = vst [vmem:[%s201 + $0x748] sm:$0xff] %v2207
        %2448 = vst [vmem:[%s201 + $0x750] sm:$0xff] %v2208
        %2449 = vst [vmem:[%s201 + $0x758] sm:$0xff] %v2209
        %2450 = vst [vmem:[%s201 + $0x760] sm:$0xff] %v2210
        %2451 = vst [vmem:[%s201 + $0x768] sm:$0xff] %v2211
        %2452 = vst [vmem:[%s201 + $0x770] sm:$0xff] %v2212
        %2453 = vst [vmem:[%s201 + $0x778] sm:$0xff] %v2213
        %s2454 = sand.u32 %s98, 1
        %s2455 = scalar_lea.sflag [#allocation5], %s2454
        %s2456 = sand.u32 %s98, 1
        %s2457 = smul.addr %s2456, 1920
        %s2458 = scalar_lea.vmem [#allocation8], %s2457
        // Predicated region
        $region41: #{tpu_custom_call.1} parent=31 // pred_check
          %p2459 = pneg %p108
        $region42: #{tpu_custom_call.1} parent=31 // pred_check_branch
          %2461 = sbr.rel (%p2459) target = $region44
        $region43: #{tpu_custom_call.1} parent=31 // pred_region
          %s2463 = ssub.s32 30720, 30720
          %2464 = vsyncadd %s2455, %s2463
          %s2465 = smul.addr %s22, 240
          %s2466 = smul.addr %s2465, 128
          %s2467 = scalar_lea.hbm %s3, %s2466
          %s2468 = sshll.u32 %s2458, 4
          %s2469 = int_to_ptr.vmem [resolvable:$true] %s2468
          %2474 = dma.vmem_to_hbm [thread:$0]  %s2469, 30720, %s2467, %s2455, 768, 768, 48
        $region44: #{tpu_custom_call.1} parent=31 // pred_fallthru
          _
      $region32: #{tpu_custom_call.1} parent=5 // pred_fallthru
        _
      %p2475 = scmp.le.s32.totalorder 2, %s17
      // Predicated region
      $region45: #{tpu_custom_call.1} parent=5 // pred_check
        %p2476 = pneg %p2475
      $region46: #{tpu_custom_call.1} parent=5 // pred_check_branch
        %2478 = sbr.rel (%p2476) target = $region48
      $region47: #{tpu_custom_call.1} parent=5 // pred_region
        %s2479 = ssub.s32 %s17, 2
        // Predicated region
        $region49: #{tpu_custom_call.1} parent=47 // pred_check
          %p2480 = pneg %p114
        $region50: #{tpu_custom_call.1} parent=47 // pred_check_branch
          %2482 = sbr.rel (%p2480) target = $region52
        $region51: #{tpu_custom_call.1} parent=47 // pred_region
          %s2483 = sand.u32 %s99, 1
          %s2484 = scalar_lea.sflag [#allocation5], %s2483
          %s2485 = sand.u32 %s99, 1
          %s2486 = smul.addr %s2485, 1920
          %s2487 = scalar_lea.vmem [#allocation8], %s2486
          %2488 = dma.done %s2484, 30720
        $region52: #{tpu_custom_call.1} parent=47 // pred_fallthru
          _
      $region48: #{tpu_custom_call.1} parent=5 // pred_fallthru
        _
    $region6: #{tpu_custom_call.1} parent=1 // loop_footer
      %s21 = sadd.s32 1, %s17
    $region7: #{tpu_custom_call.1} parent=1 // loop_footer_branch
      %16 = sbr.rel target = $region3
    $region8: #{tpu_custom_call.1} parent=1 // loop_exit
      _
    %2489 = vsyncpa [#allocation4], 1
    %s2490 = scalar_lea.sflag [#allocation4], 1
    %2491 = vsyncpa %s2490, 1
    %2492 = vsyncpa [#allocation5], 1
    %s2493 = scalar_lea.sflag [#allocation5], 1
    %2494 = vsyncpa %s2493, 1
    %2495 = vsyncpa [#allocation6], 1
    %s2496 = scalar_lea.sflag [#allocation6], 1
    %2497 = vsyncpa %s2496, 1

</llo_original>
